<compile_context>
chip_gen: v6e
topology: v6e:2x2x1
jax: 0.10.0
libtpu: 0.0.40
codegen_flags: <defaults>
</compile_context>

<pallas_src>
import functools

import jax
import jax.numpy as jnp
from jax.experimental import pallas as pl

NEG_SLOPE = 0.2   # PyG GATConv default negative_slope
NEG_BIG = -1e30   # masked-logit fill; exp underflows to exactly 0 in f32


# ------------------------------ Pallas kernel ------------------------------ #
def _gat_layer_kernel(x_ref, adj_ref, ohsrcT_ref, ohdstT_ref,
                      w1_ref, b1_ref, w2_ref, b2_ref,
                      out_ref, alpha_ref, *, heads, c_out):
    """Fused GATLayer forward: conv1 -> ReLU -> conv2 (both heads per conv).

    x_ref:       (N, F_in) f32       node features
    adj_ref:     (N, N)    int8      adj[dst, src] != 0 iff edge src->dst (incl. self loops)
    ohsrcT_ref:  (N, E_pad) f32      transposed one-hot of edge source nodes
    ohdstT_ref:  (N, E_pad) f32      transposed one-hot of edge destination nodes
    wX_ref:      (F, H*C + 2H) bf16  head-fused weights; trailing 2H columns are
                                     W_h @ att_src_h and W_h @ att_dst_h (score folding)
    bX_ref:      (1, H*C)  f32       bias added after concat
    out_ref:     (N, H*C)  f32       conv2 concatenated output features
    alpha_ref:   (2H, E_pad) f32     lane-dense per-edge alphas (rows 0..H-1: conv1,
                                     rows H..2H-1: conv2)
    """
    mask = adj_ref[...] != 0                     # int8 compare, no f32 [N,N] temp
    oh_srcT = ohsrcT_ref[...]                    # [N, E_pad]
    oh_dstT = ohdstT_ref[...]                    # [N, E_pad]
    hc = heads * c_out

    def leaky(v):
        return jnp.where(v >= 0.0, v, NEG_SLOPE * v)

    def gat_conv(feat, w_ref, b_ref):
        # One bf16 MXU matmul (f32 accumulate) yields the projected features AND
        # the per-node attention scores (att vectors folded into w_ext columns):
        #   cols [0, H*C)            -> hx (head-major, matches concat layout)
        #   cols [H*C, H*C+H)        -> a_src per head
        #   cols [H*C+H, H*C+2H)     -> a_dst per head
        hx_all = jnp.dot(feat.astype(jnp.bfloat16), w_ref[...],
                         preferred_element_type=jnp.float32)        # [N, H*C+2H]
        outs = []
        adst_rows, m_rows, den_rows, asrc_rows = [], [], [], []
        for h in range(heads):                                      # static unroll (H=2)
            hx_h = hx_all[:, h * c_out:(h + 1) * c_out]             # [N, C]
            a_src = hx_all[:, hc + h:hc + h + 1]                    # [N, 1]
            a_dst = hx_all[:, hc + heads + h:hc + heads + h + 1]    # [N, 1]
            a_src_row = jnp.transpose(a_src)                        # [1, N] tiny xpose
            # logits[i, j] = leaky_relu(a_dst[i] + a_src[j]), masked to edges.
            logits = leaky(a_dst + a_src_row)                       # [N, N]
            logits = jnp.where(mask, logits, NEG_BIG)
            # Softmax statistics stay f32.
            m = jnp.max(logits, axis=-1, keepdims=True)             # [N, 1]
            p = jnp.exp(logits - m)                                 # [N, N]; masked -> 0
            denom = jnp.sum(p, axis=-1, keepdims=True)              # [N, 1]
            # Aggregate with UNnormalized p on the MXU (bf16), then scale
            # per-node (N*C multiplies instead of N*N on the attention matrix).
            agg = jnp.dot(p.astype(jnp.bfloat16), hx_h.astype(jnp.bfloat16),
                          preferred_element_type=jnp.float32)       # [N, C]
            outs.append(agg * pl.reciprocal(denom, approx=True))    # EUP recip
            # Rows for the per-edge alpha reconstruction (tiny [N,1]->[1,N] xposes).
            adst_rows.append(jnp.transpose(a_dst))
            m_rows.append(jnp.transpose(m))
            den_rows.append(jnp.transpose(denom))
            asrc_rows.append(a_src_row)
        out = jnp.concatenate(outs, axis=-1) + b_ref[...]           # [N, H*C]

        # Per-edge alpha reconstruction: two THIN gathers ([3H,N]@[N,E_pad] and
        # [H,N]@[N,E_pad]) instead of the old [E,N]@[N,N] one-hot gather, then
        # VPU math.  Output is already lane-dense ([H, E_pad]).
        dst_stats = jnp.concatenate(adst_rows + m_rows + den_rows, axis=0)  # [3H, N]
        src_stats = jnp.concatenate(asrc_rows, axis=0)                      # [H, N]
        e_dst = jnp.dot(dst_stats, oh_dstT, preferred_element_type=jnp.float32)  # [3H, E_pad]
        e_src = jnp.dot(src_stats, oh_srcT, preferred_element_type=jnp.float32)  # [H, E_pad]
        e_adst = e_dst[:heads]                                      # [H, E_pad]
        e_m = e_dst[heads:2 * heads]
        e_den = e_dst[2 * heads:]
        e_logit = leaky(e_adst + e_src)
        # Exact reciprocal for the RETURNED alphas (correctness-review item);
        # cost is only H*E_pad divides.
        alpha = jnp.exp(e_logit - e_m) / e_den                      # [H, E_pad]
        return out, alpha

    h1, alpha1 = gat_conv(x_ref[...], w1_ref, b1_ref)
    h1 = jnp.maximum(h1, 0.0)            # fused inter-layer ReLU, VMEM-resident
    h2, alpha2 = gat_conv(h1, w2_ref, b2_ref)

    out_ref[...] = h2
    alpha_ref[...] = jnp.concatenate([alpha1, alpha2], axis=0)      # [2H, E_pad]


def _gat_layer_call(x, adj, oh_srcT, oh_dstT, p1, p2, heads, c_out):
    """Single grid-less pallas_call for the whole GATLayer forward."""
    n = x.shape[0]
    e_pad = oh_srcT.shape[1]
    hc = heads * c_out
    kernel = functools.partial(_gat_layer_kernel, heads=heads, c_out=c_out)
    # TODO(synk): tiled dst-row-block grid + scalar-prefetch edge indices for
    # realistic N (see module docstring); a single invocation is optimal here.
    return pl.pallas_call(
        kernel,
        out_shape=(
            jax.ShapeDtypeStruct((n, hc), jnp.float32),             # features
            jax.ShapeDtypeStruct((2 * heads, e_pad), jnp.float32),  # alphas (lane-dense)
        ),
    )(x, adj, oh_srcT, oh_dstT, p1.w_ext, p1.bias, p2.w_ext, p2.bias)


# ------------------------------- Module glue ------------------------------- #
class GATConvParams:
    """Parameters for one GATConv (concat=True), heads fused in the weight."""

    def __init__(self, in_channels, out_channels, heads, key):
        F, C, H = in_channels, out_channels, heads
        k_w, k_s, k_d = jax.random.split(key, 3)
        w_scale = 1.0 / jnp.sqrt(jnp.float32(F))
        a_scale = 1.0 / jnp.sqrt(jnp.float32(C))
        # TODO(synk): PyG uses Glorot init; copy torch weights for exact parity.
        self.w = jax.random.normal(k_w, (F, H * C), jnp.float32) * w_scale
        self.att_src = jax.random.normal(k_s, (H, C), jnp.float32) * a_scale
        self.att_dst = jax.random.normal(k_d, (H, C), jnp.float32) * a_scale
        self.bias = jnp.zeros((1, H * C), jnp.float32)
        # Fold the attention vectors into the projection weight: a_src/a_dst are
        # linear in x (a_src = x @ (W_h @ att_src_h)), so one MXU matmul yields
        # hx, a_src, a_dst together — no per-head XLU reductions in-kernel.
        asrc_cols = jnp.stack(
            [self.w[:, h * C:(h + 1) * C] @ self.att_src[h] for h in range(H)],
            axis=1)                                                   # [F, H]
        adst_cols = jnp.stack(
            [self.w[:, h * C:(h + 1) * C] @ self.att_dst[h] for h in range(H)],
            axis=1)                                                   # [F, H]
        # bf16 MXU operands (f32 accumulation happens in-kernel).
        self.w_ext = jnp.concatenate([self.w, asrc_cols, adst_cols],
                                     axis=1).astype(jnp.bfloat16)     # [F, H*C+2H]


class GATLayerPallas:
    """Mirror of the PyTorch GATLayer: conv1 -> relu -> conv2, returning
    (features, (edge_index, alpha1), (edge_index, alpha2))."""

    def __init__(self, in_channels, out_channels, heads=2, key=None):
        k1, k2 = jax.random.split(key)
        self.heads = heads
        self.c_out = out_channels
        self.conv1 = GATConvParams(in_channels, out_channels, heads, k1)
        self.conv2 = GATConvParams(out_channels * heads, out_channels, heads, k2)

    @staticmethod
    def _with_self_loops(edge_index, num_nodes):
        # TODO(synk): assumes the input edge list has no self loops / duplicates
        # (PyG removes then re-adds self loops); general dedup is host-side glue.
        loops = jnp.arange(num_nodes, dtype=edge_index.dtype)
        src = jnp.concatenate([edge_index[0], loops])
        dst = jnp.concatenate([edge_index[1], loops])
        return jnp.stack([src, dst])

    def __call__(self, x, edge_index):
        n = x.shape[0]
        ei_sl = self._with_self_loops(edge_index, n)
        e = ei_sl.shape[1]
        # Pad the edge axis to a multiple of 128 so the alpha slab is lane-dense
        # (unmasked vector stores).  Padded slots alias the (0,0) self loop and
        # are sliced off below.
        e_pad = ((e + 127) // 128) * 128
        pad = e_pad - e
        src, dst = ei_sl[0], ei_sl[1]
        src_p = jnp.concatenate([src, jnp.zeros((pad,), src.dtype)]) if pad else src
        dst_p = jnp.concatenate([dst, jnp.zeros((pad,), dst.dtype)]) if pad else dst

        # int8 adjacency (adj[dst, src] = 1): 4x smaller DMA/VMEM than f32.
        adj = jnp.zeros((n, n), jnp.int8).at[dst, src].set(jnp.int8(1))
        # Transposed one-hots [N, E_pad]: in-kernel stat gathers come out
        # lane-dense ([K, E_pad]) with no in-kernel transpose of wide arrays.
        node = jnp.arange(n, dtype=src_p.dtype)[:, None]
        oh_srcT = (node == src_p[None, :]).astype(jnp.float32)   # [N, E_pad]
        oh_dstT = (node == dst_p[None, :]).astype(jnp.float32)   # [N, E_pad]

        out, alpha_all = _gat_layer_call(x, adj, oh_srcT, oh_dstT,
                                         self.conv1, self.conv2,
                                         self.heads, self.c_out)
        # Back to PyG's [E, H] layout for the returned attention weights
        # (tiny wrapper-side transpose of the [H, E] slabs).
        a1 = jnp.transpose(alpha_all[:self.heads, :e])
        a2 = jnp.transpose(alpha_all[self.heads:, :e])
        return out, (ei_sl, a1), (ei_sl, a2)


# ---------------------------- plain-JAX reference --------------------------- #
def _reference_forward(x, edge_index_sl, p1, p2, heads, c_out):
    n = x.shape[0]
    src, dst = edge_index_sl[0], edge_index_sl[1]
    adj = jnp.zeros((n, n), jnp.float32).at[dst, src].set(1.0)

    def conv(feat, p):
        hx = feat @ p.w                                        # [N, H*C]
        outs, alphas = [], []
        for h in range(heads):
            hx_h = hx[:, h * c_out:(h + 1) * c_out]
            a_src = (hx_h * p.att_src[h]).sum(-1)              # [N]
            a_dst = (hx_h * p.att_dst[h]).sum(-1)              # [N]
            logits = a_dst[:, None] + a_src[None, :]
            logits = jnp.where(logits >= 0.0, logits, NEG_SLOPE * logits)
            logits = jnp.where(adj > 0.5, logits, NEG_BIG)
            attn = jax.nn.softmax(logits, axis=-1)
            outs.append(attn @ hx_h)
            alphas.append(attn[dst, src])
        return jnp.concatenate(outs, -1) + p.bias, jnp.stack(alphas, -1)

    h1, a1 = conv(x, p1)
    h1 = jax.nn.relu(h1)
    h2, a2 = conv(h1, p2)
    return h2, a1, a2


# ----------------------------------- main ----------------------------------- #
if __name__ == "__main__":
    N, F_IN, C_OUT, HEADS = 16, 8, 8, 2

    key = jax.random.PRNGKey(0)
    k_x, k_params = jax.random.split(key)
    x = jax.random.normal(k_x, (N, F_IN), jnp.float32)

    # Deterministic edge list: ring + skip-3 edges (32 directed edges, no
    # duplicates, no self loops). edge_index[0] = src, edge_index[1] = dst.
    base = jnp.arange(N, dtype=jnp.int32)
    src = jnp.concatenate([base, base])
    dst = jnp.concatenate([(base + 1) % N, (base + 3) % N])
    edge_index = jnp.stack([src, dst])

    layer = GATLayerPallas(F_IN, C_OUT, heads=HEADS, key=k_params)
    out, (ei1, alpha1), (ei2, alpha2) = layer(x, edge_index)
    jax.block_until_ready((out, alpha1, alpha2))

    E = 2 * N + N   # original edges + self loops
    assert out.shape == (N, C_OUT * HEADS)
    assert ei1.shape == (2, E) and alpha1.shape == (E, HEADS)
    assert ei2.shape == (2, E) and alpha2.shape == (E, HEADS)
    assert bool(jnp.all(jnp.isfinite(out)))
    assert bool(jnp.all(jnp.isfinite(alpha1))) and bool(jnp.all(jnp.isfinite(alpha2)))

    # Correctness vs. plain-JAX f32 reference (loose tol: bf16 MXU operands +
    # approx EUP reciprocal on the feature path).
    ref_out, ref_a1, ref_a2 = _reference_forward(
        x, ei1, layer.conv1, layer.conv2, HEADS, C_OUT)
    assert jnp.allclose(out, ref_out, rtol=5e-2, atol=5e-2)
    assert jnp.allclose(alpha1, ref_a1, rtol=5e-2, atol=5e-2)
    assert jnp.allclose(alpha2, ref_a2, rtol=5e-2, atol=5e-2)

    print("KERNEL_OK")
</pallas_src>

<mosaic_0001>
module attributes {stable_mosaic.version = 11 : i64} {
  func.func @_gat_layer_kernel(%arg0: memref<16x8xf32, #tpu.memory_space<vmem>>, %arg1: memref<16x16xi8, #tpu.memory_space<vmem>>, %arg2: memref<16x128xf32, #tpu.memory_space<vmem>>, %arg3: memref<16x128xf32, #tpu.memory_space<vmem>>, %arg4: memref<8x20xbf16, #tpu.memory_space<vmem>>, %arg5: memref<1x16xf32, #tpu.memory_space<vmem>>, %arg6: memref<16x20xbf16, #tpu.memory_space<vmem>>, %arg7: memref<1x16xf32, #tpu.memory_space<vmem>>, %arg8: memref<16x16xf32, #tpu.memory_space<vmem>>, %arg9: memref<4x128xf32, #tpu.memory_space<vmem>>) attributes {dimension_semantics = [], scalar_prefetch = 0 : i64, scratch_operands = 0 : i64, tpu.core_type = #tpu.core_type<tc>} {
    %c0 = arith.constant 0 : index
    %c0_0 = arith.constant 0 : index
    %0 = vector.load %arg1[%c0, %c0_0] : memref<16x16xi8, #tpu.memory_space<vmem>>, vector<16x16xi8>
    %c0_i8 = arith.constant 0 : i8
    %1 = vector.broadcast %c0_i8 : i8 to vector<16x16xi8>
    %2 = arith.cmpi ne, %0, %1 : vector<16x16xi8>
    %c0_1 = arith.constant 0 : index
    %c0_2 = arith.constant 0 : index
    %3 = vector.load %arg2[%c0_1, %c0_2] : memref<16x128xf32, #tpu.memory_space<vmem>>, vector<16x128xf32>
    %c0_3 = arith.constant 0 : index
    %c0_4 = arith.constant 0 : index
    %4 = vector.load %arg3[%c0_3, %c0_4] : memref<16x128xf32, #tpu.memory_space<vmem>>, vector<16x128xf32>
    %c0_5 = arith.constant 0 : index
    %c0_6 = arith.constant 0 : index
    %5 = vector.load %arg0[%c0_5, %c0_6] : memref<16x8xf32, #tpu.memory_space<vmem>>, vector<16x8xf32>
    %6 = arith.truncf %5 : vector<16x8xf32> to vector<16x8xbf16>
    %c0_7 = arith.constant 0 : index
    %c0_8 = arith.constant 0 : index
    %7 = vector.load %arg4[%c0_7, %c0_8] : memref<8x20xbf16, #tpu.memory_space<vmem>>, vector<8x20xbf16>
    %cst = arith.constant dense<0.000000e+00> : vector<16x20xf32>
    %8 = tpu.matmul %6, %7, %cst {dimension_numbers = #tpu.dot_dimension_numbers<[1], [0], [0], [1], [0, 0, 1, 1], [], []>} : vector<16x8xbf16>, vector<8x20xbf16>, vector<16x20xf32> -> vector<16x20xf32>
    %9 = vector.extract_strided_slice %8 {offsets = [0, 0], sizes = [16, 8], strides = [1, 1]} : vector<16x20xf32> to vector<16x8xf32>
    %10 = vector.extract_strided_slice %8 {offsets = [0, 16], sizes = [16, 1], strides = [1, 1]} : vector<16x20xf32> to vector<16x1xf32>
    %11 = vector.extract_strided_slice %8 {offsets = [0, 18], sizes = [16, 1], strides = [1, 1]} : vector<16x20xf32> to vector<16x1xf32>
    %12 = tpu.transpose %10, [1, 0] : vector<16x1xf32> -> vector<1x16xf32>
    %13 = vector.broadcast %11 : vector<16x1xf32> to vector<16x16xf32>
    %14 = vector.broadcast %12 : vector<1x16xf32> to vector<16x16xf32>
    %15 = arith.addf %13, %14 : vector<16x16xf32>
    %cst_9 = arith.constant 0.000000e+00 : f32
    %16 = vector.broadcast %cst_9 : f32 to vector<16x16xf32>
    %17 = arith.cmpf oge, %15, %16 : vector<16x16xf32>
    %cst_10 = arith.constant 2.000000e-01 : f32
    %18 = vector.broadcast %cst_10 : f32 to vector<16x16xf32>
    %19 = arith.mulf %18, %15 : vector<16x16xf32>
    %20 = arith.select %17, %15, %19 : vector<16x16xi1>, vector<16x16xf32>
    %cst_11 = arith.constant -1.000000e+30 : f32
    %21 = vector.broadcast %cst_11 : f32 to vector<16x16xf32>
    %22 = arith.select %2, %20, %21 : vector<16x16xi1>, vector<16x16xf32>
    %cst_12 = arith.constant dense<0xFF800000> : vector<16xf32>
    %23 = vector.multi_reduction <maximumf>, %22, %cst_12 [1] : vector<16x16xf32> to vector<16xf32>
    %24 = vector.shape_cast %23 : vector<16xf32> to vector<16x1xf32>
    %25 = vector.broadcast %24 : vector<16x1xf32> to vector<16x16xf32>
    %26 = arith.subf %22, %25 : vector<16x16xf32>
    %27 = math.exp %26 : vector<16x16xf32>
    %cst_13 = arith.constant dense<0.000000e+00> : vector<16xf32>
    %28 = vector.multi_reduction <add>, %27, %cst_13 [1] : vector<16x16xf32> to vector<16xf32>
    %29 = vector.shape_cast %28 : vector<16xf32> to vector<16x1xf32>
    %30 = arith.truncf %27 : vector<16x16xf32> to vector<16x16xbf16>
    %31 = arith.truncf %9 : vector<16x8xf32> to vector<16x8xbf16>
    %cst_14 = arith.constant dense<0.000000e+00> : vector<16x8xf32>
    %32 = tpu.matmul %30, %31, %cst_14 {dimension_numbers = #tpu.dot_dimension_numbers<[1], [0], [0], [1], [0, 0, 1, 1], [], []>} : vector<16x16xbf16>, vector<16x8xbf16>, vector<16x8xf32> -> vector<16x8xf32>
    %33 = tpu.reciprocal %29 {approx = true} : vector<16x1xf32> -> vector<16x1xf32>
    %34 = vector.broadcast %33 : vector<16x1xf32> to vector<16x8xf32>
    %35 = arith.mulf %32, %34 : vector<16x8xf32>
    %36 = tpu.transpose %11, [1, 0] : vector<16x1xf32> -> vector<1x16xf32>
    %37 = tpu.transpose %24, [1, 0] : vector<16x1xf32> -> vector<1x16xf32>
    %38 = tpu.transpose %29, [1, 0] : vector<16x1xf32> -> vector<1x16xf32>
    %39 = vector.extract_strided_slice %8 {offsets = [0, 8], sizes = [16, 8], strides = [1, 1]} : vector<16x20xf32> to vector<16x8xf32>
    %40 = vector.extract_strided_slice %8 {offsets = [0, 17], sizes = [16, 1], strides = [1, 1]} : vector<16x20xf32> to vector<16x1xf32>
    %41 = vector.extract_strided_slice %8 {offsets = [0, 19], sizes = [16, 1], strides = [1, 1]} : vector<16x20xf32> to vector<16x1xf32>
    %42 = tpu.transpose %40, [1, 0] : vector<16x1xf32> -> vector<1x16xf32>
    %43 = vector.broadcast %41 : vector<16x1xf32> to vector<16x16xf32>
    %44 = vector.broadcast %42 : vector<1x16xf32> to vector<16x16xf32>
    %45 = arith.addf %43, %44 : vector<16x16xf32>
    %cst_15 = arith.constant 0.000000e+00 : f32
    %46 = vector.broadcast %cst_15 : f32 to vector<16x16xf32>
    %47 = arith.cmpf oge, %45, %46 : vector<16x16xf32>
    %cst_16 = arith.constant 2.000000e-01 : f32
    %48 = vector.broadcast %cst_16 : f32 to vector<16x16xf32>
    %49 = arith.mulf %48, %45 : vector<16x16xf32>
    %50 = arith.select %47, %45, %49 : vector<16x16xi1>, vector<16x16xf32>
    %cst_17 = arith.constant -1.000000e+30 : f32
    %51 = vector.broadcast %cst_17 : f32 to vector<16x16xf32>
    %52 = arith.select %2, %50, %51 : vector<16x16xi1>, vector<16x16xf32>
    %cst_18 = arith.constant dense<0xFF800000> : vector<16xf32>
    %53 = vector.multi_reduction <maximumf>, %52, %cst_18 [1] : vector<16x16xf32> to vector<16xf32>
    %54 = vector.shape_cast %53 : vector<16xf32> to vector<16x1xf32>
    %55 = vector.broadcast %54 : vector<16x1xf32> to vector<16x16xf32>
    %56 = arith.subf %52, %55 : vector<16x16xf32>
    %57 = math.exp %56 : vector<16x16xf32>
    %cst_19 = arith.constant dense<0.000000e+00> : vector<16xf32>
    %58 = vector.multi_reduction <add>, %57, %cst_19 [1] : vector<16x16xf32> to vector<16xf32>
    %59 = vector.shape_cast %58 : vector<16xf32> to vector<16x1xf32>
    %60 = arith.truncf %57 : vector<16x16xf32> to vector<16x16xbf16>
    %61 = arith.truncf %39 : vector<16x8xf32> to vector<16x8xbf16>
    %cst_20 = arith.constant dense<0.000000e+00> : vector<16x8xf32>
    %62 = tpu.matmul %60, %61, %cst_20 {dimension_numbers = #tpu.dot_dimension_numbers<[1], [0], [0], [1], [0, 0, 1, 1], [], []>} : vector<16x16xbf16>, vector<16x8xbf16>, vector<16x8xf32> -> vector<16x8xf32>
    %63 = tpu.reciprocal %59 {approx = true} : vector<16x1xf32> -> vector<16x1xf32>
    %64 = vector.broadcast %63 : vector<16x1xf32> to vector<16x8xf32>
    %65 = arith.mulf %62, %64 : vector<16x8xf32>
    %66 = tpu.transpose %41, [1, 0] : vector<16x1xf32> -> vector<1x16xf32>
    %67 = tpu.transpose %54, [1, 0] : vector<16x1xf32> -> vector<1x16xf32>
    %68 = tpu.transpose %59, [1, 0] : vector<16x1xf32> -> vector<1x16xf32>
    %69 = tpu.concatenate %35, %65 in 1 : vector<16x8xf32>, vector<16x8xf32> -> vector<16x16xf32>
    %c0_21 = arith.constant 0 : index
    %c0_22 = arith.constant 0 : index
    %70 = vector.load %arg5[%c0_21, %c0_22] : memref<1x16xf32, #tpu.memory_space<vmem>>, vector<1x16xf32>
    %71 = vector.broadcast %70 : vector<1x16xf32> to vector<16x16xf32>
    %72 = arith.addf %69, %71 : vector<16x16xf32>
    %73 = tpu.concatenate %36, %66, %37, %67, %38, %68 in 0 : vector<1x16xf32>, vector<1x16xf32>, vector<1x16xf32>, vector<1x16xf32>, vector<1x16xf32>, vector<1x16xf32> -> vector<6x16xf32>
    %74 = tpu.concatenate %12, %42 in 0 : vector<1x16xf32>, vector<1x16xf32> -> vector<2x16xf32>
    %cst_23 = arith.constant dense<0.000000e+00> : vector<6x128xf32>
    %75 = tpu.matmul %73, %4, %cst_23 {dimension_numbers = #tpu.dot_dimension_numbers<[1], [0], [0], [1], [0, 0, 1, 1], [], []>} : vector<6x16xf32>, vector<16x128xf32>, vector<6x128xf32> -> vector<6x128xf32>
    %cst_24 = arith.constant dense<0.000000e+00> : vector<2x128xf32>
    %76 = tpu.matmul %74, %3, %cst_24 {dimension_numbers = #tpu.dot_dimension_numbers<[1], [0], [0], [1], [0, 0, 1, 1], [], []>} : vector<2x16xf32>, vector<16x128xf32>, vector<2x128xf32> -> vector<2x128xf32>
    %77 = vector.extract_strided_slice %75 {offsets = [0, 0], sizes = [2, 128], strides = [1, 1]} : vector<6x128xf32> to vector<2x128xf32>
    %78 = vector.extract_strided_slice %75 {offsets = [2, 0], sizes = [2, 128], strides = [1, 1]} : vector<6x128xf32> to vector<2x128xf32>
    %79 = vector.extract_strided_slice %75 {offsets = [4, 0], sizes = [2, 128], strides = [1, 1]} : vector<6x128xf32> to vector<2x128xf32>
    %80 = arith.addf %77, %76 : vector<2x128xf32>
    %cst_25 = arith.constant 0.000000e+00 : f32
    %81 = vector.broadcast %cst_25 : f32 to vector<2x128xf32>
    %82 = arith.cmpf oge, %80, %81 : vector<2x128xf32>
    %cst_26 = arith.constant 2.000000e-01 : f32
    %83 = vector.broadcast %cst_26 : f32 to vector<2x128xf32>
    %84 = arith.mulf %83, %80 : vector<2x128xf32>
    %85 = arith.select %82, %80, %84 : vector<2x128xi1>, vector<2x128xf32>
    %86 = arith.subf %85, %78 : vector<2x128xf32>
    %87 = math.exp %86 : vector<2x128xf32>
    %88 = arith.divf %87, %79 : vector<2x128xf32>
    %cst_27 = arith.constant 0.000000e+00 : f32
    %89 = vector.broadcast %cst_27 : f32 to vector<16x16xf32>
    %90 = arith.maximumf %72, %89 : vector<16x16xf32>
    %91 = arith.truncf %90 : vector<16x16xf32> to vector<16x16xbf16>
    %c0_28 = arith.constant 0 : index
    %c0_29 = arith.constant 0 : index
    %92 = vector.load %arg6[%c0_28, %c0_29] : memref<16x20xbf16, #tpu.memory_space<vmem>>, vector<16x20xbf16>
    %cst_30 = arith.constant dense<0.000000e+00> : vector<16x20xf32>
    %93 = tpu.matmul %91, %92, %cst_30 {dimension_numbers = #tpu.dot_dimension_numbers<[1], [0], [0], [1], [0, 0, 1, 1], [], []>} : vector<16x16xbf16>, vector<16x20xbf16>, vector<16x20xf32> -> vector<16x20xf32>
    %94 = vector.extract_strided_slice %93 {offsets = [0, 0], sizes = [16, 8], strides = [1, 1]} : vector<16x20xf32> to vector<16x8xf32>
    %95 = vector.extract_strided_slice %93 {offsets = [0, 16], sizes = [16, 1], strides = [1, 1]} : vector<16x20xf32> to vector<16x1xf32>
    %96 = vector.extract_strided_slice %93 {offsets = [0, 18], sizes = [16, 1], strides = [1, 1]} : vector<16x20xf32> to vector<16x1xf32>
    %97 = tpu.transpose %95, [1, 0] : vector<16x1xf32> -> vector<1x16xf32>
    %98 = vector.broadcast %96 : vector<16x1xf32> to vector<16x16xf32>
    %99 = vector.broadcast %97 : vector<1x16xf32> to vector<16x16xf32>
    %100 = arith.addf %98, %99 : vector<16x16xf32>
    %cst_31 = arith.constant 0.000000e+00 : f32
    %101 = vector.broadcast %cst_31 : f32 to vector<16x16xf32>
    %102 = arith.cmpf oge, %100, %101 : vector<16x16xf32>
    %cst_32 = arith.constant 2.000000e-01 : f32
    %103 = vector.broadcast %cst_32 : f32 to vector<16x16xf32>
    %104 = arith.mulf %103, %100 : vector<16x16xf32>
    %105 = arith.select %102, %100, %104 : vector<16x16xi1>, vector<16x16xf32>
    %cst_33 = arith.constant -1.000000e+30 : f32
    %106 = vector.broadcast %cst_33 : f32 to vector<16x16xf32>
    %107 = arith.select %2, %105, %106 : vector<16x16xi1>, vector<16x16xf32>
    %cst_34 = arith.constant dense<0xFF800000> : vector<16xf32>
    %108 = vector.multi_reduction <maximumf>, %107, %cst_34 [1] : vector<16x16xf32> to vector<16xf32>
    %109 = vector.shape_cast %108 : vector<16xf32> to vector<16x1xf32>
    %110 = vector.broadcast %109 : vector<16x1xf32> to vector<16x16xf32>
    %111 = arith.subf %107, %110 : vector<16x16xf32>
    %112 = math.exp %111 : vector<16x16xf32>
    %cst_35 = arith.constant dense<0.000000e+00> : vector<16xf32>
    %113 = vector.multi_reduction <add>, %112, %cst_35 [1] : vector<16x16xf32> to vector<16xf32>
    %114 = vector.shape_cast %113 : vector<16xf32> to vector<16x1xf32>
    %115 = arith.truncf %112 : vector<16x16xf32> to vector<16x16xbf16>
    %116 = arith.truncf %94 : vector<16x8xf32> to vector<16x8xbf16>
    %cst_36 = arith.constant dense<0.000000e+00> : vector<16x8xf32>
    %117 = tpu.matmul %115, %116, %cst_36 {dimension_numbers = #tpu.dot_dimension_numbers<[1], [0], [0], [1], [0, 0, 1, 1], [], []>} : vector<16x16xbf16>, vector<16x8xbf16>, vector<16x8xf32> -> vector<16x8xf32>
    %118 = tpu.reciprocal %114 {approx = true} : vector<16x1xf32> -> vector<16x1xf32>
    %119 = vector.broadcast %118 : vector<16x1xf32> to vector<16x8xf32>
    %120 = arith.mulf %117, %119 : vector<16x8xf32>
    %121 = tpu.transpose %96, [1, 0] : vector<16x1xf32> -> vector<1x16xf32>
    %122 = tpu.transpose %109, [1, 0] : vector<16x1xf32> -> vector<1x16xf32>
    %123 = tpu.transpose %114, [1, 0] : vector<16x1xf32> -> vector<1x16xf32>
    %124 = vector.extract_strided_slice %93 {offsets = [0, 8], sizes = [16, 8], strides = [1, 1]} : vector<16x20xf32> to vector<16x8xf32>
    %125 = vector.extract_strided_slice %93 {offsets = [0, 17], sizes = [16, 1], strides = [1, 1]} : vector<16x20xf32> to vector<16x1xf32>
    %126 = vector.extract_strided_slice %93 {offsets = [0, 19], sizes = [16, 1], strides = [1, 1]} : vector<16x20xf32> to vector<16x1xf32>
    %127 = tpu.transpose %125, [1, 0] : vector<16x1xf32> -> vector<1x16xf32>
    %128 = vector.broadcast %126 : vector<16x1xf32> to vector<16x16xf32>
    %129 = vector.broadcast %127 : vector<1x16xf32> to vector<16x16xf32>
    %130 = arith.addf %128, %129 : vector<16x16xf32>
    %cst_37 = arith.constant 0.000000e+00 : f32
    %131 = vector.broadcast %cst_37 : f32 to vector<16x16xf32>
    %132 = arith.cmpf oge, %130, %131 : vector<16x16xf32>
    %cst_38 = arith.constant 2.000000e-01 : f32
    %133 = vector.broadcast %cst_38 : f32 to vector<16x16xf32>
    %134 = arith.mulf %133, %130 : vector<16x16xf32>
    %135 = arith.select %132, %130, %134 : vector<16x16xi1>, vector<16x16xf32>
    %cst_39 = arith.constant -1.000000e+30 : f32
    %136 = vector.broadcast %cst_39 : f32 to vector<16x16xf32>
    %137 = arith.select %2, %135, %136 : vector<16x16xi1>, vector<16x16xf32>
    %cst_40 = arith.constant dense<0xFF800000> : vector<16xf32>
    %138 = vector.multi_reduction <maximumf>, %137, %cst_40 [1] : vector<16x16xf32> to vector<16xf32>
    %139 = vector.shape_cast %138 : vector<16xf32> to vector<16x1xf32>
    %140 = vector.broadcast %139 : vector<16x1xf32> to vector<16x16xf32>
    %141 = arith.subf %137, %140 : vector<16x16xf32>
    %142 = math.exp %141 : vector<16x16xf32>
    %cst_41 = arith.constant dense<0.000000e+00> : vector<16xf32>
    %143 = vector.multi_reduction <add>, %142, %cst_41 [1] : vector<16x16xf32> to vector<16xf32>
    %144 = vector.shape_cast %143 : vector<16xf32> to vector<16x1xf32>
    %145 = arith.truncf %142 : vector<16x16xf32> to vector<16x16xbf16>
    %146 = arith.truncf %124 : vector<16x8xf32> to vector<16x8xbf16>
    %cst_42 = arith.constant dense<0.000000e+00> : vector<16x8xf32>
    %147 = tpu.matmul %145, %146, %cst_42 {dimension_numbers = #tpu.dot_dimension_numbers<[1], [0], [0], [1], [0, 0, 1, 1], [], []>} : vector<16x16xbf16>, vector<16x8xbf16>, vector<16x8xf32> -> vector<16x8xf32>
    %148 = tpu.reciprocal %144 {approx = true} : vector<16x1xf32> -> vector<16x1xf32>
    %149 = vector.broadcast %148 : vector<16x1xf32> to vector<16x8xf32>
    %150 = arith.mulf %147, %149 : vector<16x8xf32>
    %151 = tpu.transpose %126, [1, 0] : vector<16x1xf32> -> vector<1x16xf32>
    %152 = tpu.transpose %139, [1, 0] : vector<16x1xf32> -> vector<1x16xf32>
    %153 = tpu.transpose %144, [1, 0] : vector<16x1xf32> -> vector<1x16xf32>
    %154 = tpu.concatenate %120, %150 in 1 : vector<16x8xf32>, vector<16x8xf32> -> vector<16x16xf32>
    %c0_43 = arith.constant 0 : index
    %c0_44 = arith.constant 0 : index
    %155 = vector.load %arg7[%c0_43, %c0_44] : memref<1x16xf32, #tpu.memory_space<vmem>>, vector<1x16xf32>
    %156 = vector.broadcast %155 : vector<1x16xf32> to vector<16x16xf32>
    %157 = arith.addf %154, %156 : vector<16x16xf32>
    %158 = tpu.concatenate %121, %151, %122, %152, %123, %153 in 0 : vector<1x16xf32>, vector<1x16xf32>, vector<1x16xf32>, vector<1x16xf32>, vector<1x16xf32>, vector<1x16xf32> -> vector<6x16xf32>
    %159 = tpu.concatenate %97, %127 in 0 : vector<1x16xf32>, vector<1x16xf32> -> vector<2x16xf32>
    %cst_45 = arith.constant dense<0.000000e+00> : vector<6x128xf32>
    %160 = tpu.matmul %158, %4, %cst_45 {dimension_numbers = #tpu.dot_dimension_numbers<[1], [0], [0], [1], [0, 0, 1, 1], [], []>} : vector<6x16xf32>, vector<16x128xf32>, vector<6x128xf32> -> vector<6x128xf32>
    %cst_46 = arith.constant dense<0.000000e+00> : vector<2x128xf32>
    %161 = tpu.matmul %159, %3, %cst_46 {dimension_numbers = #tpu.dot_dimension_numbers<[1], [0], [0], [1], [0, 0, 1, 1], [], []>} : vector<2x16xf32>, vector<16x128xf32>, vector<2x128xf32> -> vector<2x128xf32>
    %162 = vector.extract_strided_slice %160 {offsets = [0, 0], sizes = [2, 128], strides = [1, 1]} : vector<6x128xf32> to vector<2x128xf32>
    %163 = vector.extract_strided_slice %160 {offsets = [2, 0], sizes = [2, 128], strides = [1, 1]} : vector<6x128xf32> to vector<2x128xf32>
    %164 = vector.extract_strided_slice %160 {offsets = [4, 0], sizes = [2, 128], strides = [1, 1]} : vector<6x128xf32> to vector<2x128xf32>
    %165 = arith.addf %162, %161 : vector<2x128xf32>
    %cst_47 = arith.constant 0.000000e+00 : f32
    %166 = vector.broadcast %cst_47 : f32 to vector<2x128xf32>
    %167 = arith.cmpf oge, %165, %166 : vector<2x128xf32>
    %cst_48 = arith.constant 2.000000e-01 : f32
    %168 = vector.broadcast %cst_48 : f32 to vector<2x128xf32>
    %169 = arith.mulf %168, %165 : vector<2x128xf32>
    %170 = arith.select %167, %165, %169 : vector<2x128xi1>, vector<2x128xf32>
    %171 = arith.subf %170, %163 : vector<2x128xf32>
    %172 = math.exp %171 : vector<2x128xf32>
    %173 = arith.divf %172, %164 : vector<2x128xf32>
    %c0_49 = arith.constant 0 : index
    %c0_50 = arith.constant 0 : index
    %174 = vector.load %arg8[%c0_49, %c0_50] : memref<16x16xf32, #tpu.memory_space<vmem>>, vector<16x16xf32>
    tpu.vector_store %arg8[%c0_49, %c0_50], %157 {strides = array<i32>} : memref<16x16xf32, #tpu.memory_space<vmem>>, vector<16x16xf32>,
    %175 = tpu.concatenate %88, %173 in 0 : vector<2x128xf32>, vector<2x128xf32> -> vector<4x128xf32>
    %c0_51 = arith.constant 0 : index
    %c0_52 = arith.constant 0 : index
    %176 = vector.load %arg9[%c0_51, %c0_52] : memref<4x128xf32, #tpu.memory_space<vmem>>, vector<4x128xf32>
    tpu.vector_store %arg9[%c0_51, %c0_52], %175 {strides = array<i32>} : memref<4x128xf32, #tpu.memory_space<vmem>>, vector<4x128xf32>,
    return
  }
}

</mosaic_0001>

<llo_original>
// kernel: tpu_custom_call.1
$region0: #{tpu_custom_call.1}
  #allocation0 [shape = 'u32[]', space=smem, size = 0x4, offset = 0x4, fixed_abs, tag = 'smem constant byte address 0x4 - core index']
  #allocation1 [shape = 'u32[144,128]{1,0:T(1,128)}', space=vmem, size = 0x12000, scoped, tag = 'internal scratch']
  %s0 = inlined_call_operand.vmem [shape: f32[16,8], index: 0, kind: input, shape index: {}]
  %s1 = inlined_call_operand.hbm [shape: s8[16,16], index: 1, kind: input, shape index: {}]
  %s2 = inlined_call_operand.vmem [shape: f32[16,128], index: 2, kind: input, shape index: {}]
  %s3 = inlined_call_operand.hbm [shape: f32[16,128], index: 3, kind: input, shape index: {}]
  %s4 = inlined_call_operand.vmem [shape: bf16[8,20], index: 4, kind: input, shape index: {}]
  %s5 = inlined_call_operand.vmem [shape: f32[1,16], index: 5, kind: input, shape index: {}]
  %s6 = inlined_call_operand.vmem [shape: bf16[16,20], index: 6, kind: input, shape index: {}]
  %s7 = inlined_call_operand.vmem [shape: f32[1,16], index: 7, kind: input, shape index: {}]
  %s8 = inlined_call_operand.hbm [shape: f32[16,16], index: 8, kind: output, shape index: {0}]
  %s9 = inlined_call_operand.hbm [shape: f32[4,128], index: 9, kind: output, shape index: {1}]
  %10 = xla_tuple %s8, %s9
  %s11 = sld [smem:[#allocation0]]
  $region58: #{tpu_custom_call.1} parent=0
    _
  %s13 = ssub.s32 1, %s11
  %s14 = scalar_select 0, %s13, %s11
  $region1: #{tpu_custom_call.1} parent=0
    #allocation2 [shape = 'u8[2048]{0}', space=vmem, size = 0x800, scoped, tag = 'input window, operand 1, single buffered']
    #allocation3 [shape = 's32[1]{0}', space=sflag, size = 0x4, scoped, tag = 'scoped memory for tpu_custom_call.1']
    #allocation4 [shape = 's32[1]{0}', space=sflag, size = 0x4, scoped, tag = 'scoped memory for tpu_custom_call.1']
    #allocation5 [shape = 'u8[8192]{0}', space=vmem, size = 0x2000, scoped, tag = 'input window, operand 3, single buffered']
    #allocation6 [shape = 's32[1]{0}', space=sflag, size = 0x4, scoped, tag = 'scoped memory for tpu_custom_call.1']
    #allocation7 [shape = 'u8[8192]{0}', space=vmem, size = 0x2000, scoped, tag = 'output window, operand 0, single buffered']
    #allocation8 [shape = 'u8[2048]{0}', space=vmem, size = 0x800, scoped, tag = 'output window, operand 1, single buffered']
    #allocation9 [shape = 's32[1]{0}', space=sflag, size = 0x4, scoped, tag = 'scoped memory for tpu_custom_call.1']
    %15 = vsyncpa [#allocation3], 0
    %16 = vsyncpa [#allocation6], 0
    %17 = vsyncpa [#allocation4], 0
    %18 = vsyncpa [#allocation9], 0
    // Predicated region
    $region2: #{tpu_custom_call.1} parent=1 // pred_check
      _
    $region3: #{tpu_custom_call.1} parent=1 // pred_check_branch
      %20 = sbr.rel (0) target = $region5
    $region4: #{tpu_custom_call.1} parent=1 // pred_region
      _
    $region5: #{tpu_custom_call.1} parent=1 // pred_fallthru
      _
    // Predicated region
    $region6: #{tpu_custom_call.1} parent=1 // pred_check
      _
    $region7: #{tpu_custom_call.1} parent=1 // pred_check_branch
      %22 = sbr.rel (0) target = $region9
    $region8: #{tpu_custom_call.1} parent=1 // pred_region
      %s24 = ssub.s32 64, 64
      %25 = vsyncadd [#allocation3], %s24
      %s26 = sshll.u32 [#allocation2], 4
      %s27 = int_to_ptr.vmem [resolvable:$true] %s26
      %32 = dma.hbm_to_vmem [thread:$0]  %s1, 64, %s27, [#allocation3], 32, 32, 2
    $region9: #{tpu_custom_call.1} parent=1 // pred_fallthru
      _
    // Predicated region
    $region10: #{tpu_custom_call.1} parent=1 // pred_check
      _
    $region11: #{tpu_custom_call.1} parent=1 // pred_check_branch
      %34 = sbr.rel (0) target = $region13
    $region12: #{tpu_custom_call.1} parent=1 // pred_region
      _
    $region13: #{tpu_custom_call.1} parent=1 // pred_fallthru
      _
    // Predicated region
    $region14: #{tpu_custom_call.1} parent=1 // pred_check
      _
    $region15: #{tpu_custom_call.1} parent=1 // pred_check_branch
      %36 = sbr.rel (0) target = $region17
    $region16: #{tpu_custom_call.1} parent=1 // pred_region
      %s38 = ssub.s32 256, 256
      %39 = vsyncadd [#allocation6], %s38
      %s40 = sshll.u32 [#allocation5], 4
      %s41 = int_to_ptr.vmem [resolvable:$true] %s40
      %46 = dma.hbm_to_vmem [thread:$0]  %s3, 256, %s41, [#allocation6], 128, 128, 8
    $region17: #{tpu_custom_call.1} parent=1 // pred_fallthru
      _
    // Predicated region
    $region18: #{tpu_custom_call.1} parent=1 // pred_check
      _
    $region19: #{tpu_custom_call.1} parent=1 // pred_check_branch
      %48 = sbr.rel (0) target = $region21
    $region20: #{tpu_custom_call.1} parent=1 // pred_region
      _
    $region21: #{tpu_custom_call.1} parent=1 // pred_fallthru
      _
    // Predicated region
    $region22: #{tpu_custom_call.1} parent=1 // pred_check
      _
    $region23: #{tpu_custom_call.1} parent=1 // pred_check_branch
      %50 = sbr.rel (0) target = $region25
    $region24: #{tpu_custom_call.1} parent=1 // pred_region
      _
    $region25: #{tpu_custom_call.1} parent=1 // pred_fallthru
      _
    // Predicated region
    $region26: #{tpu_custom_call.1} parent=1 // pred_check
      _
    $region27: #{tpu_custom_call.1} parent=1 // pred_check_branch
      %52 = sbr.rel (0) target = $region29
    $region28: #{tpu_custom_call.1} parent=1 // pred_region
      _
    $region29: #{tpu_custom_call.1} parent=1 // pred_fallthru
      _
    // Predicated region
    $region30: #{tpu_custom_call.1} parent=1 // pred_check
      _
    $region31: #{tpu_custom_call.1} parent=1 // pred_check_branch
      %54 = sbr.rel (0) target = $region33
    $region32: #{tpu_custom_call.1} parent=1 // pred_region
      _
    $region33: #{tpu_custom_call.1} parent=1 // pred_fallthru
      _
    // Predicated region
    $region34: #{tpu_custom_call.1} parent=1 // pred_check
      _
    $region35: #{tpu_custom_call.1} parent=1 // pred_check_branch
      %56 = sbr.rel (0) target = $region37
    $region36: #{tpu_custom_call.1} parent=1 // pred_region
      %57 = dma.done [#allocation3], 64
    $region37: #{tpu_custom_call.1} parent=1 // pred_fallthru
      _
    // Predicated region
    $region38: #{tpu_custom_call.1} parent=1 // pred_check
      _
    $region39: #{tpu_custom_call.1} parent=1 // pred_check_branch
      %59 = sbr.rel (0) target = $region41
    $region40: #{tpu_custom_call.1} parent=1 // pred_region
      %60 = dma.done [#allocation6], 256
    $region41: #{tpu_custom_call.1} parent=1 // pred_fallthru
      _
    %v64 = vld [vmem:[#allocation2] sm:$0x3]
    %v65 = vld [vmem:[#allocation2 + $0x2] sm:$0x3]
    %vm66 = vnez %v64
    %vm67 = vnez %v65
    %v68 = vld [vmem:[%s2] sm:$0xff]
    %v69 = vld [vmem:[%s2 + $0x8] sm:$0xff]
    %v70 = vld [vmem:[#allocation5] sm:$0xff]
    %v71 = vld [vmem:[#allocation5 + $0x8] sm:$0xff]
    %v72 = vld [vmem:[%s0] sm:$0xff]
    %v73 = vld [vmem:[%s0 + $0x8] sm:$0xff]
    %v74 = vpack.c.bf16 %v73, %v72
    %v75 = vld [vmem:[%s4] sm:$0xf]
    %vm76 = vcmask 64512
    %v78 = vsel %vm76, %v74, 0
    %vm80 = vcmask 1043456
    %v82 = vsel %vm80, %v75, 0
    %84 = vmatprep.subr.bf16.mxu0 0
    %85 = vmatpush1.bf16.msra.mxu0 0
    %86 = vmatprep.subr.bf16.mxu0 0
    %87 = vmatpush1.bf16.msra.mxu0 0
    %88 = vmatprep.subr.bf16.mxu0 0
    %89 = vmatpush1.bf16.msra.mxu0 0
    %90 = vmatprep.subr.bf16.mxu0 0
    %91 = vmatpush1.bf16.msra.mxu0 0
    %92 = vmatprep.subr.bf16.mxu0 0
    %93 = vmatpush1.bf16.msra.mxu0 0
    %94 = vmatprep.subr.bf16.mxu0 0
    %95 = vmatpush1.bf16.msra.mxu0 0
    %96 = vmatprep.subr.bf16.mxu0 0
    %97 = vmatpush1.bf16.msra.mxu0 0
    %98 = vmatprep.subr.bf16.mxu0 0
    %99 = vmatpush1.bf16.msra.mxu0 %v82
    %100 = vmatprep.subr.bf16.mxu0 0
    %101 = vmatpush2.bf16.msra.mxu0 0
    %102 = vmatprep.subr.bf16.mxu0 0
    %103 = vmatpush2.bf16.msra.mxu0 0
    %104 = vmatprep.subr.bf16.mxu0 0
    %105 = vmatpush2.bf16.msra.mxu0 0
    %106 = vmatprep.subr.bf16.mxu0 0
    %107 = vmatpush2.bf16.msra.mxu0 0
    %108 = vmatprep.subr.bf16.mxu0 0
    %109 = vmatpush2.bf16.msra.mxu0 0
    %110 = vmatprep.subr.bf16.mxu0 0
    %111 = vmatpush2.bf16.msra.mxu0 0
    %112 = vmatprep.subr.bf16.mxu0 0
    %113 = vmatpush2.bf16.msra.mxu0 0
    %114 = vmatprep.subr.bf16.mxu0 0
    %115 = vmatpush2.bf16.msra.mxu0 0
    %116 = vmatprep.mubr.bf16.mxu0 0
    %117 = vmatmul.mubr.bf16.gmra.mxu0 %v78
    %v118 = vpop.f32.mrf.mxu0
    %v119 = vadd.f32 0.0, %v118
    %v120 = vpop.f32.mrf.mxu0
    %v121 = vpop.f32.mrf.mxu0
    %v122 = vadd.f32 0.0, %v121
    %v123 = vpop.f32.mrf.mxu0
    %124 = vdwg.mxu0
    %127 = vrot.lane.b32.xlu0 %v119, 112
    %v128 = vpop.permute.xlu0 %127
    %129 = vrot.lane.b32.xlu0 %v122, 112
    %v130 = vpop.permute.xlu0 %129
    %133 = vxpose.xlu0.b32.start [1/16] %v128, 128
    %134 = vxpose.xlu0.b32.cont [2/16] %v130, 128
    %135 = vxpose.xlu0.b32.cont [3/16] 0.0, 128
    %136 = vxpose.xlu0.b32.cont [4/16] 0.0, 128
    %137 = vxpose.xlu0.b32.cont [5/16] 0.0, 128
    %138 = vxpose.xlu0.b32.cont [6/16] 0.0, 128
    %139 = vxpose.xlu0.b32.cont [7/16] 0.0, 128
    %140 = vxpose.xlu0.b32.cont [8/16] 0.0, 128
    %141 = vxpose.xlu0.b32.cont [9/16] 0.0, 128
    %142 = vxpose.xlu0.b32.cont [10/16] 0.0, 128
    %143 = vxpose.xlu0.b32.cont [11/16] 0.0, 128
    %144 = vxpose.xlu0.b32.cont [12/16] 0.0, 128
    %145 = vxpose.xlu0.b32.cont [13/16] 0.0, 128
    %146 = vxpose.xlu0.b32.cont [14/16] 0.0, 128
    %147 = vxpose.xlu0.b32.cont [15/16] 0.0, 128
    %148 = vxpose.xlu0.b32.end [16/16] 0.0, 128
    %v149 = vpop.trf.xlu0
    %v150 = vpop.trf.xlu0
    %v151 = vpop.trf.xlu0
    %v152 = vpop.trf.xlu0
    %v153 = vpop.trf.xlu0
    %v154 = vpop.trf.xlu0
    %v155 = vpop.trf.xlu0
    %v156 = vpop.trf.xlu0
    %v157 = vpop.trf.xlu0
    %v158 = vpop.trf.xlu0
    %v159 = vpop.trf.xlu0
    %v160 = vpop.trf.xlu0
    %v161 = vpop.trf.xlu0
    %v162 = vpop.trf.xlu0
    %v163 = vpop.trf.xlu0
    %v164 = vpop.trf.xlu0
    %165 = vset.pattern.permute.xlu0 18
    %166 = vperm.xlu0 %165, %v119
    %v167 = vpop.permute.xlu0 %166
    %169 = vset.pattern.permute.xlu0 18
    %170 = vperm.xlu0 %169, %v122
    %v171 = vpop.permute.xlu0 %170
    %v173 = vlaneseq
    %v174 = vshrl.u32 %v173, 7
    %v175 = vsub.s32 0, %v174
    %v176 = vrot.slane %v149, %v175
    %v177 = vadd.f32 %v167, %v176
    %v178 = vadd.f32 %v171, %v176
    %vm179 = vcmp.ge.f32.partialorder %v177, 0.0
    %vm180 = vcmp.ge.f32.partialorder %v178, 0.0
    %v181 = vmul.f32 %v177, 0.2
    %v182 = vmul.f32 %v178, 0.2
    %v183 = vsel %vm179, %v177, %v181
    %v184 = vsel %vm180, %v178, %v182
    %v185 = vsel %vm66, 16843009, 0
    %v186 = vsel %vm67, 16843009, 0
    %v187 = vunpack.c.0.s8 %v185
    %v188 = vunpack.c.0.s8 %v186
    %vm189 = vcmp.ne.s32.totalorder %v187, 0
    %vm190 = vcmp.ne.s32.totalorder %v188, 0
    %v191 = vsel %vm189, %v183, -1e+30
    %v192 = vsel %vm190, %v184, -1e+30
    %vm193 = vcmask 130048
    %v194 = vsel %vm193, %v191, -inf
    %195 = vmax.xlane.f32.xlu0 %v194
    %v196 = vpop.xlane.xlu0 %195
    %v197 = vsel %vm193, %v192, -inf
    %198 = vmax.xlane.f32.xlu0 %v197
    %v199 = vpop.xlane.xlu0 %198
    %v200 = vsub.f32 %v191, %v196
    %v201 = vsub.f32 %v192, %v199
    %v202 = vmul.f32 %v200, 1.442695
    %v203 = vpow.pop %v202
    %v204 = vmul.f32 %v201, 1.442695
    %v205 = vpow.pop %v204
    %v206 = vsel %vm193, %v203, 0.0
    %207 = vadd.xlane.f32.xlu0 %v206
    %v208 = vpop.xlane.xlu0 %207
    %v209 = vsel %vm193, %v205, 0.0
    %210 = vadd.xlane.f32.xlu0 %v209
    %v211 = vpop.xlane.xlu0 %210
    %v212 = vpack.c.bf16 %v205, %v203
    %v213 = vpack.c.bf16 %v122, %v119
    %v215 = vsel %vm193, %v212, 0
    %217 = vmatprep.subr.bf16.mxu0 0
    %218 = vmatpush1.bf16.msra.mxu0 0
    %219 = vmatprep.subr.bf16.mxu0 0
    %220 = vmatpush1.bf16.msra.mxu0 0
    %221 = vmatprep.subr.bf16.mxu0 0
    %222 = vmatpush1.bf16.msra.mxu0 0
    %223 = vmatprep.subr.bf16.mxu0 0
    %224 = vmatpush1.bf16.msra.mxu0 0
    %225 = vmatprep.subr.bf16.mxu0 0
    %226 = vmatpush1.bf16.msra.mxu0 0
    %227 = vmatprep.subr.bf16.mxu0 0
    %228 = vmatpush1.bf16.msra.mxu0 0
    %229 = vmatprep.subr.bf16.mxu0 0
    %230 = vmatpush1.bf16.msra.mxu0 0
    %231 = vmatprep.subr.bf16.mxu0 0
    %232 = vmatpush1.bf16.msra.mxu0 %v213
    %233 = vmatprep.subr.bf16.mxu0 0
    %234 = vmatpush2.bf16.msra.mxu0 0
    %235 = vmatprep.subr.bf16.mxu0 0
    %236 = vmatpush2.bf16.msra.mxu0 0
    %237 = vmatprep.subr.bf16.mxu0 0
    %238 = vmatpush2.bf16.msra.mxu0 0
    %239 = vmatprep.subr.bf16.mxu0 0
    %240 = vmatpush2.bf16.msra.mxu0 0
    %241 = vmatprep.subr.bf16.mxu0 0
    %242 = vmatpush2.bf16.msra.mxu0 0
    %243 = vmatprep.subr.bf16.mxu0 0
    %244 = vmatpush2.bf16.msra.mxu0 0
    %245 = vmatprep.subr.bf16.mxu0 0
    %246 = vmatpush2.bf16.msra.mxu0 0
    %247 = vmatprep.subr.bf16.mxu0 0
    %248 = vmatpush2.bf16.msra.mxu0 0
    %249 = vmatprep.mubr.bf16.mxu0 0
    %250 = vmatmul.mubr.bf16.gmra.mxu0 %v215
    %v251 = vpop.f32.mrf.mxu0
    %v252 = vadd.f32 0.0, %v251
    %v253 = vpop.f32.mrf.mxu0
    %v254 = vpop.f32.mrf.mxu0
    %v255 = vadd.f32 0.0, %v254
    %v256 = vpop.f32.mrf.mxu0
    %257 = vdwg.mxu0
    %v258 = vrcp.pop %v208
    %v259 = vrcp.pop %v211
    %v260 = vmul.f32 %v252, %v258
    %v261 = vmul.f32 %v255, %v259
    %262 = vrot.lane.b32.xlu0 %v119, 110
    %v263 = vpop.permute.xlu0 %262
    %264 = vrot.lane.b32.xlu0 %v122, 110
    %v265 = vpop.permute.xlu0 %264
    %268 = vxpose.xlu0.b32.start [1/16] %v263, 128
    %269 = vxpose.xlu0.b32.cont [2/16] %v265, 128
    %270 = vxpose.xlu0.b32.cont [3/16] 0.0, 128
    %271 = vxpose.xlu0.b32.cont [4/16] 0.0, 128
    %272 = vxpose.xlu0.b32.cont [5/16] 0.0, 128
    %273 = vxpose.xlu0.b32.cont [6/16] 0.0, 128
    %274 = vxpose.xlu0.b32.cont [7/16] 0.0, 128
    %275 = vxpose.xlu0.b32.cont [8/16] 0.0, 128
    %276 = vxpose.xlu0.b32.cont [9/16] 0.0, 128
    %277 = vxpose.xlu0.b32.cont [10/16] 0.0, 128
    %278 = vxpose.xlu0.b32.cont [11/16] 0.0, 128
    %279 = vxpose.xlu0.b32.cont [12/16] 0.0, 128
    %280 = vxpose.xlu0.b32.cont [13/16] 0.0, 128
    %281 = vxpose.xlu0.b32.cont [14/16] 0.0, 128
    %282 = vxpose.xlu0.b32.cont [15/16] 0.0, 128
    %283 = vxpose.xlu0.b32.end [16/16] 0.0, 128
    %v284 = vpop.trf.xlu0
    %v285 = vpop.trf.xlu0
    %v286 = vpop.trf.xlu0
    %v287 = vpop.trf.xlu0
    %v288 = vpop.trf.xlu0
    %v289 = vpop.trf.xlu0
    %v290 = vpop.trf.xlu0
    %v291 = vpop.trf.xlu0
    %v292 = vpop.trf.xlu0
    %v293 = vpop.trf.xlu0
    %v294 = vpop.trf.xlu0
    %v295 = vpop.trf.xlu0
    %v296 = vpop.trf.xlu0
    %v297 = vpop.trf.xlu0
    %v298 = vpop.trf.xlu0
    %v299 = vpop.trf.xlu0
    %300 = vxpose.xlu0.b32.start [1/16] %v196, 128
    %301 = vxpose.xlu0.b32.cont [2/16] %v199, 128
    %302 = vxpose.xlu0.b32.cont [3/16] 0.0, 128
    %303 = vxpose.xlu0.b32.cont [4/16] 0.0, 128
    %304 = vxpose.xlu0.b32.cont [5/16] 0.0, 128
    %305 = vxpose.xlu0.b32.cont [6/16] 0.0, 128
    %306 = vxpose.xlu0.b32.cont [7/16] 0.0, 128
    %307 = vxpose.xlu0.b32.cont [8/16] 0.0, 128
    %308 = vxpose.xlu0.b32.cont [9/16] 0.0, 128
    %309 = vxpose.xlu0.b32.cont [10/16] 0.0, 128
    %310 = vxpose.xlu0.b32.cont [11/16] 0.0, 128
    %311 = vxpose.xlu0.b32.cont [12/16] 0.0, 128
    %312 = vxpose.xlu0.b32.cont [13/16] 0.0, 128
    %313 = vxpose.xlu0.b32.cont [14/16] 0.0, 128
    %314 = vxpose.xlu0.b32.cont [15/16] 0.0, 128
    %315 = vxpose.xlu0.b32.end [16/16] 0.0, 128
    %v316 = vpop.trf.xlu0
    %v317 = vpop.trf.xlu0
    %v318 = vpop.trf.xlu0
    %v319 = vpop.trf.xlu0
    %v320 = vpop.trf.xlu0
    %v321 = vpop.trf.xlu0
    %v322 = vpop.trf.xlu0
    %v323 = vpop.trf.xlu0
    %v324 = vpop.trf.xlu0
    %v325 = vpop.trf.xlu0
    %v326 = vpop.trf.xlu0
    %v327 = vpop.trf.xlu0
    %v328 = vpop.trf.xlu0
    %v329 = vpop.trf.xlu0
    %v330 = vpop.trf.xlu0
    %v331 = vpop.trf.xlu0
    %332 = vxpose.xlu0.b32.start [1/16] %v208, 128
    %333 = vxpose.xlu0.b32.cont [2/16] %v211, 128
    %334 = vxpose.xlu0.b32.cont [3/16] 0.0, 128
    %335 = vxpose.xlu0.b32.cont [4/16] 0.0, 128
    %336 = vxpose.xlu0.b32.cont [5/16] 0.0, 128
    %337 = vxpose.xlu0.b32.cont [6/16] 0.0, 128
    %338 = vxpose.xlu0.b32.cont [7/16] 0.0, 128
    %339 = vxpose.xlu0.b32.cont [8/16] 0.0, 128
    %340 = vxpose.xlu0.b32.cont [9/16] 0.0, 128
    %341 = vxpose.xlu0.b32.cont [10/16] 0.0, 128
    %342 = vxpose.xlu0.b32.cont [11/16] 0.0, 128
    %343 = vxpose.xlu0.b32.cont [12/16] 0.0, 128
    %344 = vxpose.xlu0.b32.cont [13/16] 0.0, 128
    %345 = vxpose.xlu0.b32.cont [14/16] 0.0, 128
    %346 = vxpose.xlu0.b32.cont [15/16] 0.0, 128
    %347 = vxpose.xlu0.b32.end [16/16] 0.0, 128
    %v348 = vpop.trf.xlu0
    %v349 = vpop.trf.xlu0
    %v350 = vpop.trf.xlu0
    %v351 = vpop.trf.xlu0
    %v352 = vpop.trf.xlu0
    %v353 = vpop.trf.xlu0
    %v354 = vpop.trf.xlu0
    %v355 = vpop.trf.xlu0
    %v356 = vpop.trf.xlu0
    %v357 = vpop.trf.xlu0
    %v358 = vpop.trf.xlu0
    %v359 = vpop.trf.xlu0
    %v360 = vpop.trf.xlu0
    %v361 = vpop.trf.xlu0
    %v362 = vpop.trf.xlu0
    %v363 = vpop.trf.xlu0
    %364 = vrot.lane.b32.xlu0 %v119, 111
    %v365 = vpop.permute.xlu0 %364
    %366 = vrot.lane.b32.xlu0 %v122, 111
    %v367 = vpop.permute.xlu0 %366
    %370 = vxpose.xlu0.b32.start [1/16] %v365, 128
    %371 = vxpose.xlu0.b32.cont [2/16] %v367, 128
    %372 = vxpose.xlu0.b32.cont [3/16] 0.0, 128
    %373 = vxpose.xlu0.b32.cont [4/16] 0.0, 128
    %374 = vxpose.xlu0.b32.cont [5/16] 0.0, 128
    %375 = vxpose.xlu0.b32.cont [6/16] 0.0, 128
    %376 = vxpose.xlu0.b32.cont [7/16] 0.0, 128
    %377 = vxpose.xlu0.b32.cont [8/16] 0.0, 128
    %378 = vxpose.xlu0.b32.cont [9/16] 0.0, 128
    %379 = vxpose.xlu0.b32.cont [10/16] 0.0, 128
    %380 = vxpose.xlu0.b32.cont [11/16] 0.0, 128
    %381 = vxpose.xlu0.b32.cont [12/16] 0.0, 128
    %382 = vxpose.xlu0.b32.cont [13/16] 0.0, 128
    %383 = vxpose.xlu0.b32.cont [14/16] 0.0, 128
    %384 = vxpose.xlu0.b32.cont [15/16] 0.0, 128
    %385 = vxpose.xlu0.b32.end [16/16] 0.0, 128
    %v386 = vpop.trf.xlu0
    %v387 = vpop.trf.xlu0
    %v388 = vpop.trf.xlu0
    %v389 = vpop.trf.xlu0
    %v390 = vpop.trf.xlu0
    %v391 = vpop.trf.xlu0
    %v392 = vpop.trf.xlu0
    %v393 = vpop.trf.xlu0
    %v394 = vpop.trf.xlu0
    %v395 = vpop.trf.xlu0
    %v396 = vpop.trf.xlu0
    %v397 = vpop.trf.xlu0
    %v398 = vpop.trf.xlu0
    %v399 = vpop.trf.xlu0
    %v400 = vpop.trf.xlu0
    %v401 = vpop.trf.xlu0
    %402 = vset.pattern.permute.xlu0 19
    %403 = vperm.xlu0 %402, %v119
    %v404 = vpop.permute.xlu0 %403
    %406 = vset.pattern.permute.xlu0 19
    %407 = vperm.xlu0 %406, %v122
    %v408 = vpop.permute.xlu0 %407
    %v410 = vlaneseq
    %v411 = vshrl.u32 %v410, 7
    %v412 = vsub.s32 0, %v411
    %v413 = vrot.slane %v386, %v412
    %v414 = vadd.f32 %v404, %v413
    %v415 = vadd.f32 %v408, %v413
    %vm416 = vcmp.ge.f32.partialorder %v414, 0.0
    %vm417 = vcmp.ge.f32.partialorder %v415, 0.0
    %v418 = vmul.f32 %v414, 0.2
    %v419 = vmul.f32 %v415, 0.2
    %v420 = vsel %vm416, %v414, %v418
    %v421 = vsel %vm417, %v415, %v419
    %v422 = vsel %vm189, %v420, -1e+30
    %v423 = vsel %vm190, %v421, -1e+30
    %v424 = vsel %vm193, %v422, -inf
    %425 = vmax.xlane.f32.xlu0 %v424
    %v426 = vpop.xlane.xlu0 %425
    %v427 = vsel %vm193, %v423, -inf
    %428 = vmax.xlane.f32.xlu0 %v427
    %v429 = vpop.xlane.xlu0 %428
    %v430 = vsub.f32 %v422, %v426
    %v431 = vsub.f32 %v423, %v429
    %v432 = vmul.f32 %v430, 1.442695
    %v433 = vpow.pop %v432
    %v434 = vmul.f32 %v431, 1.442695
    %v435 = vpow.pop %v434
    %v436 = vsel %vm193, %v433, 0.0
    %437 = vadd.xlane.f32.xlu0 %v436
    %v438 = vpop.xlane.xlu0 %437
    %v439 = vsel %vm193, %v435, 0.0
    %440 = vadd.xlane.f32.xlu0 %v439
    %v441 = vpop.xlane.xlu0 %440
    %v442 = vpack.c.bf16 %v435, %v433
    %444 = vrot.lane.b32.xlu0 %v213, 120
    %v445 = vpop.permute.xlu0 %444
    %v448 = vsel %vm193, %v442, 0
    %450 = vmatprep.subr.bf16.mxu0 0
    %451 = vmatpush1.bf16.msra.mxu0 0
    %452 = vmatprep.subr.bf16.mxu0 0
    %453 = vmatpush1.bf16.msra.mxu0 0
    %454 = vmatprep.subr.bf16.mxu0 0
    %455 = vmatpush1.bf16.msra.mxu0 0
    %456 = vmatprep.subr.bf16.mxu0 0
    %457 = vmatpush1.bf16.msra.mxu0 0
    %458 = vmatprep.subr.bf16.mxu0 0
    %459 = vmatpush1.bf16.msra.mxu0 0
    %460 = vmatprep.subr.bf16.mxu0 0
    %461 = vmatpush1.bf16.msra.mxu0 0
    %462 = vmatprep.subr.bf16.mxu0 0
    %463 = vmatpush1.bf16.msra.mxu0 0
    %464 = vmatprep.subr.bf16.mxu0 0
    %465 = vmatpush1.bf16.msra.mxu0 %v445
    %466 = vmatprep.subr.bf16.mxu0 0
    %467 = vmatpush2.bf16.msra.mxu0 0
    %468 = vmatprep.subr.bf16.mxu0 0
    %469 = vmatpush2.bf16.msra.mxu0 0
    %470 = vmatprep.subr.bf16.mxu0 0
    %471 = vmatpush2.bf16.msra.mxu0 0
    %472 = vmatprep.subr.bf16.mxu0 0
    %473 = vmatpush2.bf16.msra.mxu0 0
    %474 = vmatprep.subr.bf16.mxu0 0
    %475 = vmatpush2.bf16.msra.mxu0 0
    %476 = vmatprep.subr.bf16.mxu0 0
    %477 = vmatpush2.bf16.msra.mxu0 0
    %478 = vmatprep.subr.bf16.mxu0 0
    %479 = vmatpush2.bf16.msra.mxu0 0
    %480 = vmatprep.subr.bf16.mxu0 0
    %481 = vmatpush2.bf16.msra.mxu0 0
    %482 = vmatprep.mubr.bf16.mxu0 0
    %483 = vmatmul.mubr.bf16.gmra.mxu0 %v448
    %v484 = vpop.f32.mrf.mxu0
    %v485 = vadd.f32 0.0, %v484
    %v486 = vpop.f32.mrf.mxu0
    %v487 = vpop.f32.mrf.mxu0
    %v488 = vadd.f32 0.0, %v487
    %v489 = vpop.f32.mrf.mxu0
    %490 = vdwg.mxu0
    %v491 = vrcp.pop %v438
    %v492 = vrcp.pop %v441
    %v493 = vmul.f32 %v485, %v491
    %v494 = vmul.f32 %v488, %v492
    %495 = vrot.lane.b32.xlu0 %v119, 109
    %v496 = vpop.permute.xlu0 %495
    %497 = vrot.lane.b32.xlu0 %v122, 109
    %v498 = vpop.permute.xlu0 %497
    %501 = vxpose.xlu0.b32.start [1/16] %v496, 128
    %502 = vxpose.xlu0.b32.cont [2/16] %v498, 128
    %503 = vxpose.xlu0.b32.cont [3/16] 0.0, 128
    %504 = vxpose.xlu0.b32.cont [4/16] 0.0, 128
    %505 = vxpose.xlu0.b32.cont [5/16] 0.0, 128
    %506 = vxpose.xlu0.b32.cont [6/16] 0.0, 128
    %507 = vxpose.xlu0.b32.cont [7/16] 0.0, 128
    %508 = vxpose.xlu0.b32.cont [8/16] 0.0, 128
    %509 = vxpose.xlu0.b32.cont [9/16] 0.0, 128
    %510 = vxpose.xlu0.b32.cont [10/16] 0.0, 128
    %511 = vxpose.xlu0.b32.cont [11/16] 0.0, 128
    %512 = vxpose.xlu0.b32.cont [12/16] 0.0, 128
    %513 = vxpose.xlu0.b32.cont [13/16] 0.0, 128
    %514 = vxpose.xlu0.b32.cont [14/16] 0.0, 128
    %515 = vxpose.xlu0.b32.cont [15/16] 0.0, 128
    %516 = vxpose.xlu0.b32.end [16/16] 0.0, 128
    %v517 = vpop.trf.xlu0
    %v518 = vpop.trf.xlu0
    %v519 = vpop.trf.xlu0
    %v520 = vpop.trf.xlu0
    %v521 = vpop.trf.xlu0
    %v522 = vpop.trf.xlu0
    %v523 = vpop.trf.xlu0
    %v524 = vpop.trf.xlu0
    %v525 = vpop.trf.xlu0
    %v526 = vpop.trf.xlu0
    %v527 = vpop.trf.xlu0
    %v528 = vpop.trf.xlu0
    %v529 = vpop.trf.xlu0
    %v530 = vpop.trf.xlu0
    %v531 = vpop.trf.xlu0
    %v532 = vpop.trf.xlu0
    %533 = vxpose.xlu0.b32.start [1/16] %v426, 128
    %534 = vxpose.xlu0.b32.cont [2/16] %v429, 128
    %535 = vxpose.xlu0.b32.cont [3/16] 0.0, 128
    %536 = vxpose.xlu0.b32.cont [4/16] 0.0, 128
    %537 = vxpose.xlu0.b32.cont [5/16] 0.0, 128
    %538 = vxpose.xlu0.b32.cont [6/16] 0.0, 128
    %539 = vxpose.xlu0.b32.cont [7/16] 0.0, 128
    %540 = vxpose.xlu0.b32.cont [8/16] 0.0, 128
    %541 = vxpose.xlu0.b32.cont [9/16] 0.0, 128
    %542 = vxpose.xlu0.b32.cont [10/16] 0.0, 128
    %543 = vxpose.xlu0.b32.cont [11/16] 0.0, 128
    %544 = vxpose.xlu0.b32.cont [12/16] 0.0, 128
    %545 = vxpose.xlu0.b32.cont [13/16] 0.0, 128
    %546 = vxpose.xlu0.b32.cont [14/16] 0.0, 128
    %547 = vxpose.xlu0.b32.cont [15/16] 0.0, 128
    %548 = vxpose.xlu0.b32.end [16/16] 0.0, 128
    %v549 = vpop.trf.xlu0
    %v550 = vpop.trf.xlu0
    %v551 = vpop.trf.xlu0
    %v552 = vpop.trf.xlu0
    %v553 = vpop.trf.xlu0
    %v554 = vpop.trf.xlu0
    %v555 = vpop.trf.xlu0
    %v556 = vpop.trf.xlu0
    %v557 = vpop.trf.xlu0
    %v558 = vpop.trf.xlu0
    %v559 = vpop.trf.xlu0
    %v560 = vpop.trf.xlu0
    %v561 = vpop.trf.xlu0
    %v562 = vpop.trf.xlu0
    %v563 = vpop.trf.xlu0
    %v564 = vpop.trf.xlu0
    %565 = vxpose.xlu0.b32.start [1/16] %v438, 128
    %566 = vxpose.xlu0.b32.cont [2/16] %v441, 128
    %567 = vxpose.xlu0.b32.cont [3/16] 0.0, 128
    %568 = vxpose.xlu0.b32.cont [4/16] 0.0, 128
    %569 = vxpose.xlu0.b32.cont [5/16] 0.0, 128
    %570 = vxpose.xlu0.b32.cont [6/16] 0.0, 128
    %571 = vxpose.xlu0.b32.cont [7/16] 0.0, 128
    %572 = vxpose.xlu0.b32.cont [8/16] 0.0, 128
    %573 = vxpose.xlu0.b32.cont [9/16] 0.0, 128
    %574 = vxpose.xlu0.b32.cont [10/16] 0.0, 128
    %575 = vxpose.xlu0.b32.cont [11/16] 0.0, 128
    %576 = vxpose.xlu0.b32.cont [12/16] 0.0, 128
    %577 = vxpose.xlu0.b32.cont [13/16] 0.0, 128
    %578 = vxpose.xlu0.b32.cont [14/16] 0.0, 128
    %579 = vxpose.xlu0.b32.cont [15/16] 0.0, 128
    %580 = vxpose.xlu0.b32.end [16/16] 0.0, 128
    %v581 = vpop.trf.xlu0
    %v582 = vpop.trf.xlu0
    %v583 = vpop.trf.xlu0
    %v584 = vpop.trf.xlu0
    %v585 = vpop.trf.xlu0
    %v586 = vpop.trf.xlu0
    %v587 = vpop.trf.xlu0
    %v588 = vpop.trf.xlu0
    %v589 = vpop.trf.xlu0
    %v590 = vpop.trf.xlu0
    %v591 = vpop.trf.xlu0
    %v592 = vpop.trf.xlu0
    %v593 = vpop.trf.xlu0
    %v594 = vpop.trf.xlu0
    %v595 = vpop.trf.xlu0
    %v596 = vpop.trf.xlu0
    %599 = vrot.lane.b32.xlu0 %v493, 8
    %v600 = vpop.permute.xlu0 %599
    %601 = vrot.lane.b32.xlu0 %v494, 8
    %v602 = vpop.permute.xlu0 %601
    %v605 = vsel %vm76, %v260, %v600
    %v606 = vsel %vm76, %v261, %v602
    %v607 = vld [vmem:[%s5] sm:$0x1]
    %v609 = vlaneseq
    %v610 = vshrl.u32 %v609, 7
    %v611 = vsub.s32 0, %v610
    %v612 = vrot.slane %v607, %v611
    %v614 = vadd.f32 %v605, %v612
    %v615 = vadd.f32 %v606, %v612
    %v617 = vrot.slane %v517, 7
    %v620 = vrot.slane %v316, 6
    %v623 = vrot.slane %v549, 5
    %v626 = vrot.slane %v348, 4
    %v629 = vrot.slane %v581, 3
    %vm631 = vcmask 1040384
    %v632 = vsel %vm631, %v284, %v617
    %vm633 = vcmask 1041408
    %v634 = vsel %vm633, %v632, %v620
    %vm635 = vcmask 1042432
    %v636 = vsel %vm635, %v634, %v623
    %v637 = vsel %vm80, %v636, %v626
    %vm638 = vcmask 1044480
    %v639 = vsel %vm638, %v637, %v629
    %v641 = vrot.slane %v386, 7
    %v643 = vsel %vm631, %v149, %v641
    %v645 = vsel %vm193, %v639, 0
    %647 = vmatprep.subr.mxu0 0.0
    %648 = vmatpush1.msra.mxu0 0.0
    %649 = vmatprep.subr.mxu0 0.0
    %650 = vmatpush1.msra.mxu0 0.0
    %651 = vmatprep.subr.mxu0 0.0
    %652 = vmatpush1.msra.mxu0 0.0
    %653 = vmatprep.subr.mxu0 0.0
    %654 = vmatpush1.msra.mxu0 0.0
    %655 = vmatprep.subr.mxu0 0.0
    %656 = vmatpush1.msra.mxu0 0.0
    %657 = vmatprep.subr.mxu0 0.0
    %658 = vmatpush1.msra.mxu0 0.0
    %659 = vmatprep.subr.mxu0 0.0
    %660 = vmatpush1.msra.mxu0 0.0
    %661 = vmatprep.subr.mxu0 0.0
    %662 = vmatpush1.msra.mxu0 0.0
    %663 = vmatprep.subr.mxu0 0.0
    %664 = vmatpush1.msra.mxu0 0.0
    %665 = vmatprep.subr.mxu0 0.0
    %666 = vmatpush1.msra.mxu0 0.0
    %667 = vmatprep.subr.mxu0 0.0
    %668 = vmatpush1.msra.mxu0 0.0
    %669 = vmatprep.subr.mxu0 0.0
    %670 = vmatpush1.msra.mxu0 0.0
    %671 = vmatprep.subr.mxu0 0.0
    %672 = vmatpush1.msra.mxu0 0.0
    %673 = vmatprep.subr.mxu0 0.0
    %674 = vmatpush1.msra.mxu0 0.0
    %675 = vmatprep.subr.mxu0 0.0
    %676 = vmatpush1.msra.mxu0 %v71
    %677 = vmatprep.subr.mxu0 0.0
    %678 = vmatpush1.msra.mxu0 %v70
    %679 = vmatprep.subr.mxu0 0.0
    %680 = vmatpush2.msra.mxu0 0.0
    %681 = vmatprep.subr.mxu0 0.0
    %682 = vmatpush2.msra.mxu0 0.0
    %683 = vmatprep.subr.mxu0 0.0
    %684 = vmatpush2.msra.mxu0 0.0
    %685 = vmatprep.subr.mxu0 0.0
    %686 = vmatpush2.msra.mxu0 0.0
    %687 = vmatprep.subr.mxu0 0.0
    %688 = vmatpush2.msra.mxu0 0.0
    %689 = vmatprep.subr.mxu0 0.0
    %690 = vmatpush2.msra.mxu0 0.0
    %691 = vmatprep.subr.mxu0 0.0
    %692 = vmatpush2.msra.mxu0 0.0
    %693 = vmatprep.subr.mxu0 0.0
    %694 = vmatpush2.msra.mxu0 0.0
    %695 = vmatprep.subr.mxu0 0.0
    %696 = vmatpush2.msra.mxu0 0.0
    %697 = vmatprep.subr.mxu0 0.0
    %698 = vmatpush2.msra.mxu0 0.0
    %699 = vmatprep.subr.mxu0 0.0
    %700 = vmatpush2.msra.mxu0 0.0
    %701 = vmatprep.subr.mxu0 0.0
    %702 = vmatpush2.msra.mxu0 0.0
    %703 = vmatprep.subr.mxu0 0.0
    %704 = vmatpush2.msra.mxu0 0.0
    %705 = vmatprep.subr.mxu0 0.0
    %706 = vmatpush2.msra.mxu0 0.0
    %707 = vmatprep.subr.mxu0 0.0
    %708 = vmatpush2.msra.mxu0 0.0
    %709 = vmatprep.subr.mxu0 0.0
    %710 = vmatpush2.msra.mxu0 0.0
    %711 = vmatprep.mubr.f32.mxu0 0.0
    %712 = vmatmul.mubr.f32.gmra.mxu0 %v645
    %v713 = vpop.f32.mrf.mxu0
    %v714 = vadd.f32 0.0, %v713
    %v715 = vpop.f32.mrf.mxu0
    %716 = vdwg.mxu0
    %v718 = vsel %vm193, %v643, 0
    %720 = vmatprep.subr.mxu0 0.0
    %721 = vmatpush1.msra.mxu0 0.0
    %722 = vmatprep.subr.mxu0 0.0
    %723 = vmatpush1.msra.mxu0 0.0
    %724 = vmatprep.subr.mxu0 0.0
    %725 = vmatpush1.msra.mxu0 0.0
    %726 = vmatprep.subr.mxu0 0.0
    %727 = vmatpush1.msra.mxu0 0.0
    %728 = vmatprep.subr.mxu0 0.0
    %729 = vmatpush1.msra.mxu0 0.0
    %730 = vmatprep.subr.mxu0 0.0
    %731 = vmatpush1.msra.mxu0 0.0
    %732 = vmatprep.subr.mxu0 0.0
    %733 = vmatpush1.msra.mxu0 0.0
    %734 = vmatprep.subr.mxu0 0.0
    %735 = vmatpush1.msra.mxu0 0.0
    %736 = vmatprep.subr.mxu0 0.0
    %737 = vmatpush1.msra.mxu0 0.0
    %738 = vmatprep.subr.mxu0 0.0
    %739 = vmatpush1.msra.mxu0 0.0
    %740 = vmatprep.subr.mxu0 0.0
    %741 = vmatpush1.msra.mxu0 0.0
    %742 = vmatprep.subr.mxu0 0.0
    %743 = vmatpush1.msra.mxu0 0.0
    %744 = vmatprep.subr.mxu0 0.0
    %745 = vmatpush1.msra.mxu0 0.0
    %746 = vmatprep.subr.mxu0 0.0
    %747 = vmatpush1.msra.mxu0 0.0
    %748 = vmatprep.subr.mxu0 0.0
    %749 = vmatpush1.msra.mxu0 %v69
    %750 = vmatprep.subr.mxu0 0.0
    %751 = vmatpush1.msra.mxu0 %v68
    %752 = vmatprep.subr.mxu0 0.0
    %753 = vmatpush2.msra.mxu0 0.0
    %754 = vmatprep.subr.mxu0 0.0
    %755 = vmatpush2.msra.mxu0 0.0
    %756 = vmatprep.subr.mxu0 0.0
    %757 = vmatpush2.msra.mxu0 0.0
    %758 = vmatprep.subr.mxu0 0.0
    %759 = vmatpush2.msra.mxu0 0.0
    %760 = vmatprep.subr.mxu0 0.0
    %761 = vmatpush2.msra.mxu0 0.0
    %762 = vmatprep.subr.mxu0 0.0
    %763 = vmatpush2.msra.mxu0 0.0
    %764 = vmatprep.subr.mxu0 0.0
    %765 = vmatpush2.msra.mxu0 0.0
    %766 = vmatprep.subr.mxu0 0.0
    %767 = vmatpush2.msra.mxu0 0.0
    %768 = vmatprep.subr.mxu0 0.0
    %769 = vmatpush2.msra.mxu0 0.0
    %770 = vmatprep.subr.mxu0 0.0
    %771 = vmatpush2.msra.mxu0 0.0
    %772 = vmatprep.subr.mxu0 0.0
    %773 = vmatpush2.msra.mxu0 0.0
    %774 = vmatprep.subr.mxu0 0.0
    %775 = vmatpush2.msra.mxu0 0.0
    %776 = vmatprep.subr.mxu0 0.0
    %777 = vmatpush2.msra.mxu0 0.0
    %778 = vmatprep.subr.mxu0 0.0
    %779 = vmatpush2.msra.mxu0 0.0
    %780 = vmatprep.subr.mxu0 0.0
    %781 = vmatpush2.msra.mxu0 0.0
    %782 = vmatprep.subr.mxu0 0.0
    %783 = vmatpush2.msra.mxu0 0.0
    %784 = vmatprep.mubr.f32.mxu0 0.0
    %785 = vmatmul.mubr.f32.gmra.mxu0 %v718
    %v786 = vpop.f32.mrf.mxu0
    %v787 = vadd.f32 0.0, %v786
    %v788 = vpop.f32.mrf.mxu0
    %789 = vdwg.mxu0
    %v790 = vadd.f32 %v714, %v787
    %vm791 = vcmp.ge.f32.partialorder %v790, 0.0
    %v792 = vmul.f32 %v790, 0.2
    %v793 = vsel %vm791, %v790, %v792
    %v795 = vrot.slane %v714, 2
    %v797 = vsub.f32 %v793, %v795
    %v798 = vmul.f32 %v797, 1.442695
    %v799 = vpow.pop %v798
    %v800 = vrot.slane %v714, 4
    %v802 = vrcp.pop %v800
    %v803 = vmul.f32 %v799, %v802
    %v804 = vmax.f32 %v614, 0.0
    %v805 = vmax.f32 %v615, 0.0
    %v806 = vpack.c.bf16 %v805, %v804
    %v807 = vld [vmem:[%s6] sm:$0xf]
    %v808 = vld [vmem:[%s6 + $0x4] sm:$0xf]
    %v811 = vunpack.c.l.b16 %v807
    %v812 = vunpack.c.l.b16 %v808
    %v813 = vpack.c.b16 %v812, %v811
    %v816 = vsel %vm193, %v806, 0
    %818 = vmatprep.subr.bf16.mxu0 0
    %819 = vmatpush1.bf16.msra.mxu0 0
    %820 = vmatprep.subr.bf16.mxu0 0
    %821 = vmatpush1.bf16.msra.mxu0 0
    %822 = vmatprep.subr.bf16.mxu0 0
    %823 = vmatpush1.bf16.msra.mxu0 0
    %824 = vmatprep.subr.bf16.mxu0 0
    %825 = vmatpush1.bf16.msra.mxu0 0
    %826 = vmatprep.subr.bf16.mxu0 0
    %827 = vmatpush1.bf16.msra.mxu0 0
    %828 = vmatprep.subr.bf16.mxu0 0
    %829 = vmatpush1.bf16.msra.mxu0 0
    %830 = vmatprep.subr.bf16.mxu0 0
    %831 = vmatpush1.bf16.msra.mxu0 0
    %832 = vmatprep.subr.bf16.mxu0 0
    %833 = vmatpush1.bf16.msra.mxu0 %v813
    %834 = vmatprep.subr.bf16.mxu0 0
    %835 = vmatpush2.bf16.msra.mxu0 0
    %836 = vmatprep.subr.bf16.mxu0 0
    %837 = vmatpush2.bf16.msra.mxu0 0
    %838 = vmatprep.subr.bf16.mxu0 0
    %839 = vmatpush2.bf16.msra.mxu0 0
    %840 = vmatprep.subr.bf16.mxu0 0
    %841 = vmatpush2.bf16.msra.mxu0 0
    %842 = vmatprep.subr.bf16.mxu0 0
    %843 = vmatpush2.bf16.msra.mxu0 0
    %844 = vmatprep.subr.bf16.mxu0 0
    %845 = vmatpush2.bf16.msra.mxu0 0
    %846 = vmatprep.subr.bf16.mxu0 0
    %847 = vmatpush2.bf16.msra.mxu0 0
    %848 = vmatprep.subr.bf16.mxu0 0
    %849 = vmatpush2.bf16.msra.mxu0 0
    %850 = vmatprep.mubr.bf16.mxu0 0
    %851 = vmatmul.mubr.bf16.gmra.mxu0 %v816
    %v852 = vpop.f32.mrf.mxu0
    %v853 = vadd.f32 0.0, %v852
    %v854 = vpop.f32.mrf.mxu0
    %v855 = vpop.f32.mrf.mxu0
    %v856 = vadd.f32 0.0, %v855
    %v857 = vpop.f32.mrf.mxu0
    %858 = vdwg.mxu0
    %861 = vrot.lane.b32.xlu0 %v853, 112
    %v862 = vpop.permute.xlu0 %861
    %863 = vrot.lane.b32.xlu0 %v856, 112
    %v864 = vpop.permute.xlu0 %863
    %867 = vxpose.xlu0.b32.start [1/16] %v862, 128
    %868 = vxpose.xlu0.b32.cont [2/16] %v864, 128
    %869 = vxpose.xlu0.b32.cont [3/16] 0.0, 128
    %870 = vxpose.xlu0.b32.cont [4/16] 0.0, 128
    %871 = vxpose.xlu0.b32.cont [5/16] 0.0, 128
    %872 = vxpose.xlu0.b32.cont [6/16] 0.0, 128
    %873 = vxpose.xlu0.b32.cont [7/16] 0.0, 128
    %874 = vxpose.xlu0.b32.cont [8/16] 0.0, 128
    %875 = vxpose.xlu0.b32.cont [9/16] 0.0, 128
    %876 = vxpose.xlu0.b32.cont [10/16] 0.0, 128
    %877 = vxpose.xlu0.b32.cont [11/16] 0.0, 128
    %878 = vxpose.xlu0.b32.cont [12/16] 0.0, 128
    %879 = vxpose.xlu0.b32.cont [13/16] 0.0, 128
    %880 = vxpose.xlu0.b32.cont [14/16] 0.0, 128
    %881 = vxpose.xlu0.b32.cont [15/16] 0.0, 128
    %882 = vxpose.xlu0.b32.end [16/16] 0.0, 128
    %v883 = vpop.trf.xlu0
    %v884 = vpop.trf.xlu0
    %v885 = vpop.trf.xlu0
    %v886 = vpop.trf.xlu0
    %v887 = vpop.trf.xlu0
    %v888 = vpop.trf.xlu0
    %v889 = vpop.trf.xlu0
    %v890 = vpop.trf.xlu0
    %v891 = vpop.trf.xlu0
    %v892 = vpop.trf.xlu0
    %v893 = vpop.trf.xlu0
    %v894 = vpop.trf.xlu0
    %v895 = vpop.trf.xlu0
    %v896 = vpop.trf.xlu0
    %v897 = vpop.trf.xlu0
    %v898 = vpop.trf.xlu0
    %899 = vset.pattern.permute.xlu0 18
    %900 = vperm.xlu0 %899, %v853
    %v901 = vpop.permute.xlu0 %900
    %903 = vset.pattern.permute.xlu0 18
    %904 = vperm.xlu0 %903, %v856
    %v905 = vpop.permute.xlu0 %904
    %v907 = vlaneseq
    %v908 = vshrl.u32 %v907, 7
    %v909 = vsub.s32 0, %v908
    %v910 = vrot.slane %v883, %v909
    %v911 = vadd.f32 %v901, %v910
    %v912 = vadd.f32 %v905, %v910
    %vm913 = vcmp.ge.f32.partialorder %v911, 0.0
    %vm914 = vcmp.ge.f32.partialorder %v912, 0.0
    %v915 = vmul.f32 %v911, 0.2
    %v916 = vmul.f32 %v912, 0.2
    %v917 = vsel %vm913, %v911, %v915
    %v918 = vsel %vm914, %v912, %v916
    %v919 = vsel %vm189, %v917, -1e+30
    %v920 = vsel %vm190, %v918, -1e+30
    %v921 = vsel %vm193, %v919, -inf
    %922 = vmax.xlane.f32.xlu0 %v921
    %v923 = vpop.xlane.xlu0 %922
    %v924 = vsel %vm193, %v920, -inf
    %925 = vmax.xlane.f32.xlu0 %v924
    %v926 = vpop.xlane.xlu0 %925
    %v927 = vsub.f32 %v919, %v923
    %v928 = vsub.f32 %v920, %v926
    %v929 = vmul.f32 %v927, 1.442695
    %v930 = vpow.pop %v929
    %v931 = vmul.f32 %v928, 1.442695
    %v932 = vpow.pop %v931
    %v933 = vsel %vm193, %v930, 0.0
    %934 = vadd.xlane.f32.xlu0 %v933
    %v935 = vpop.xlane.xlu0 %934
    %v936 = vsel %vm193, %v932, 0.0
    %937 = vadd.xlane.f32.xlu0 %v936
    %v938 = vpop.xlane.xlu0 %937
    %v939 = vpack.c.bf16 %v932, %v930
    %v940 = vpack.c.bf16 %v856, %v853
    %v942 = vsel %vm193, %v939, 0
    %944 = vmatprep.subr.bf16.mxu0 0
    %945 = vmatpush1.bf16.msra.mxu0 0
    %946 = vmatprep.subr.bf16.mxu0 0
    %947 = vmatpush1.bf16.msra.mxu0 0
    %948 = vmatprep.subr.bf16.mxu0 0
    %949 = vmatpush1.bf16.msra.mxu0 0
    %950 = vmatprep.subr.bf16.mxu0 0
    %951 = vmatpush1.bf16.msra.mxu0 0
    %952 = vmatprep.subr.bf16.mxu0 0
    %953 = vmatpush1.bf16.msra.mxu0 0
    %954 = vmatprep.subr.bf16.mxu0 0
    %955 = vmatpush1.bf16.msra.mxu0 0
    %956 = vmatprep.subr.bf16.mxu0 0
    %957 = vmatpush1.bf16.msra.mxu0 0
    %958 = vmatprep.subr.bf16.mxu0 0
    %959 = vmatpush1.bf16.msra.mxu0 %v940
    %960 = vmatprep.subr.bf16.mxu0 0
    %961 = vmatpush2.bf16.msra.mxu0 0
    %962 = vmatprep.subr.bf16.mxu0 0
    %963 = vmatpush2.bf16.msra.mxu0 0
    %964 = vmatprep.subr.bf16.mxu0 0
    %965 = vmatpush2.bf16.msra.mxu0 0
    %966 = vmatprep.subr.bf16.mxu0 0
    %967 = vmatpush2.bf16.msra.mxu0 0
    %968 = vmatprep.subr.bf16.mxu0 0
    %969 = vmatpush2.bf16.msra.mxu0 0
    %970 = vmatprep.subr.bf16.mxu0 0
    %971 = vmatpush2.bf16.msra.mxu0 0
    %972 = vmatprep.subr.bf16.mxu0 0
    %973 = vmatpush2.bf16.msra.mxu0 0
    %974 = vmatprep.subr.bf16.mxu0 0
    %975 = vmatpush2.bf16.msra.mxu0 0
    %976 = vmatprep.mubr.bf16.mxu0 0
    %977 = vmatmul.mubr.bf16.gmra.mxu0 %v942
    %v978 = vpop.f32.mrf.mxu0
    %v979 = vadd.f32 0.0, %v978
    %v980 = vpop.f32.mrf.mxu0
    %v981 = vpop.f32.mrf.mxu0
    %v982 = vadd.f32 0.0, %v981
    %v983 = vpop.f32.mrf.mxu0
    %984 = vdwg.mxu0
    %v985 = vrcp.pop %v935
    %v986 = vrcp.pop %v938
    %v987 = vmul.f32 %v979, %v985
    %v988 = vmul.f32 %v982, %v986
    %989 = vrot.lane.b32.xlu0 %v853, 110
    %v990 = vpop.permute.xlu0 %989
    %991 = vrot.lane.b32.xlu0 %v856, 110
    %v992 = vpop.permute.xlu0 %991
    %995 = vxpose.xlu0.b32.start [1/16] %v990, 128
    %996 = vxpose.xlu0.b32.cont [2/16] %v992, 128
    %997 = vxpose.xlu0.b32.cont [3/16] 0.0, 128
    %998 = vxpose.xlu0.b32.cont [4/16] 0.0, 128
    %999 = vxpose.xlu0.b32.cont [5/16] 0.0, 128
    %1000 = vxpose.xlu0.b32.cont [6/16] 0.0, 128
    %1001 = vxpose.xlu0.b32.cont [7/16] 0.0, 128
    %1002 = vxpose.xlu0.b32.cont [8/16] 0.0, 128
    %1003 = vxpose.xlu0.b32.cont [9/16] 0.0, 128
    %1004 = vxpose.xlu0.b32.cont [10/16] 0.0, 128
    %1005 = vxpose.xlu0.b32.cont [11/16] 0.0, 128
    %1006 = vxpose.xlu0.b32.cont [12/16] 0.0, 128
    %1007 = vxpose.xlu0.b32.cont [13/16] 0.0, 128
    %1008 = vxpose.xlu0.b32.cont [14/16] 0.0, 128
    %1009 = vxpose.xlu0.b32.cont [15/16] 0.0, 128
    %1010 = vxpose.xlu0.b32.end [16/16] 0.0, 128
    %v1011 = vpop.trf.xlu0
    %v1012 = vpop.trf.xlu0
    %v1013 = vpop.trf.xlu0
    %v1014 = vpop.trf.xlu0
    %v1015 = vpop.trf.xlu0
    %v1016 = vpop.trf.xlu0
    %v1017 = vpop.trf.xlu0
    %v1018 = vpop.trf.xlu0
    %v1019 = vpop.trf.xlu0
    %v1020 = vpop.trf.xlu0
    %v1021 = vpop.trf.xlu0
    %v1022 = vpop.trf.xlu0
    %v1023 = vpop.trf.xlu0
    %v1024 = vpop.trf.xlu0
    %v1025 = vpop.trf.xlu0
    %v1026 = vpop.trf.xlu0
    %1027 = vxpose.xlu0.b32.start [1/16] %v923, 128
    %1028 = vxpose.xlu0.b32.cont [2/16] %v926, 128
    %1029 = vxpose.xlu0.b32.cont [3/16] 0.0, 128
    %1030 = vxpose.xlu0.b32.cont [4/16] 0.0, 128
    %1031 = vxpose.xlu0.b32.cont [5/16] 0.0, 128
    %1032 = vxpose.xlu0.b32.cont [6/16] 0.0, 128
    %1033 = vxpose.xlu0.b32.cont [7/16] 0.0, 128
    %1034 = vxpose.xlu0.b32.cont [8/16] 0.0, 128
    %1035 = vxpose.xlu0.b32.cont [9/16] 0.0, 128
    %1036 = vxpose.xlu0.b32.cont [10/16] 0.0, 128
    %1037 = vxpose.xlu0.b32.cont [11/16] 0.0, 128
    %1038 = vxpose.xlu0.b32.cont [12/16] 0.0, 128
    %1039 = vxpose.xlu0.b32.cont [13/16] 0.0, 128
    %1040 = vxpose.xlu0.b32.cont [14/16] 0.0, 128
    %1041 = vxpose.xlu0.b32.cont [15/16] 0.0, 128
    %1042 = vxpose.xlu0.b32.end [16/16] 0.0, 128
    %v1043 = vpop.trf.xlu0
    %v1044 = vpop.trf.xlu0
    %v1045 = vpop.trf.xlu0
    %v1046 = vpop.trf.xlu0
    %v1047 = vpop.trf.xlu0
    %v1048 = vpop.trf.xlu0
    %v1049 = vpop.trf.xlu0
    %v1050 = vpop.trf.xlu0
    %v1051 = vpop.trf.xlu0
    %v1052 = vpop.trf.xlu0
    %v1053 = vpop.trf.xlu0
    %v1054 = vpop.trf.xlu0
    %v1055 = vpop.trf.xlu0
    %v1056 = vpop.trf.xlu0
    %v1057 = vpop.trf.xlu0
    %v1058 = vpop.trf.xlu0
    %1059 = vxpose.xlu0.b32.start [1/16] %v935, 128
    %1060 = vxpose.xlu0.b32.cont [2/16] %v938, 128
    %1061 = vxpose.xlu0.b32.cont [3/16] 0.0, 128
    %1062 = vxpose.xlu0.b32.cont [4/16] 0.0, 128
    %1063 = vxpose.xlu0.b32.cont [5/16] 0.0, 128
    %1064 = vxpose.xlu0.b32.cont [6/16] 0.0, 128
    %1065 = vxpose.xlu0.b32.cont [7/16] 0.0, 128
    %1066 = vxpose.xlu0.b32.cont [8/16] 0.0, 128
    %1067 = vxpose.xlu0.b32.cont [9/16] 0.0, 128
    %1068 = vxpose.xlu0.b32.cont [10/16] 0.0, 128
    %1069 = vxpose.xlu0.b32.cont [11/16] 0.0, 128
    %1070 = vxpose.xlu0.b32.cont [12/16] 0.0, 128
    %1071 = vxpose.xlu0.b32.cont [13/16] 0.0, 128
    %1072 = vxpose.xlu0.b32.cont [14/16] 0.0, 128
    %1073 = vxpose.xlu0.b32.cont [15/16] 0.0, 128
    %1074 = vxpose.xlu0.b32.end [16/16] 0.0, 128
    %v1075 = vpop.trf.xlu0
    %v1076 = vpop.trf.xlu0
    %v1077 = vpop.trf.xlu0
    %v1078 = vpop.trf.xlu0
    %v1079 = vpop.trf.xlu0
    %v1080 = vpop.trf.xlu0
    %v1081 = vpop.trf.xlu0
    %v1082 = vpop.trf.xlu0
    %v1083 = vpop.trf.xlu0
    %v1084 = vpop.trf.xlu0
    %v1085 = vpop.trf.xlu0
    %v1086 = vpop.trf.xlu0
    %v1087 = vpop.trf.xlu0
    %v1088 = vpop.trf.xlu0
    %v1089 = vpop.trf.xlu0
    %v1090 = vpop.trf.xlu0
    %1091 = vrot.lane.b32.xlu0 %v853, 111
    %v1092 = vpop.permute.xlu0 %1091
    %1093 = vrot.lane.b32.xlu0 %v856, 111
    %v1094 = vpop.permute.xlu0 %1093
    %1097 = vxpose.xlu0.b32.start [1/16] %v1092, 128
    %1098 = vxpose.xlu0.b32.cont [2/16] %v1094, 128
    %1099 = vxpose.xlu0.b32.cont [3/16] 0.0, 128
    %1100 = vxpose.xlu0.b32.cont [4/16] 0.0, 128
    %1101 = vxpose.xlu0.b32.cont [5/16] 0.0, 128
    %1102 = vxpose.xlu0.b32.cont [6/16] 0.0, 128
    %1103 = vxpose.xlu0.b32.cont [7/16] 0.0, 128
    %1104 = vxpose.xlu0.b32.cont [8/16] 0.0, 128
    %1105 = vxpose.xlu0.b32.cont [9/16] 0.0, 128
    %1106 = vxpose.xlu0.b32.cont [10/16] 0.0, 128
    %1107 = vxpose.xlu0.b32.cont [11/16] 0.0, 128
    %1108 = vxpose.xlu0.b32.cont [12/16] 0.0, 128
    %1109 = vxpose.xlu0.b32.cont [13/16] 0.0, 128
    %1110 = vxpose.xlu0.b32.cont [14/16] 0.0, 128
    %1111 = vxpose.xlu0.b32.cont [15/16] 0.0, 128
    %1112 = vxpose.xlu0.b32.end [16/16] 0.0, 128
    %v1113 = vpop.trf.xlu0
    %v1114 = vpop.trf.xlu0
    %v1115 = vpop.trf.xlu0
    %v1116 = vpop.trf.xlu0
    %v1117 = vpop.trf.xlu0
    %v1118 = vpop.trf.xlu0
    %v1119 = vpop.trf.xlu0
    %v1120 = vpop.trf.xlu0
    %v1121 = vpop.trf.xlu0
    %v1122 = vpop.trf.xlu0
    %v1123 = vpop.trf.xlu0
    %v1124 = vpop.trf.xlu0
    %v1125 = vpop.trf.xlu0
    %v1126 = vpop.trf.xlu0
    %v1127 = vpop.trf.xlu0
    %v1128 = vpop.trf.xlu0
    %1129 = vset.pattern.permute.xlu0 19
    %1130 = vperm.xlu0 %1129, %v853
    %v1131 = vpop.permute.xlu0 %1130
    %1133 = vset.pattern.permute.xlu0 19
    %1134 = vperm.xlu0 %1133, %v856
    %v1135 = vpop.permute.xlu0 %1134
    %v1137 = vlaneseq
    %v1138 = vshrl.u32 %v1137, 7
    %v1139 = vsub.s32 0, %v1138
    %v1140 = vrot.slane %v1113, %v1139
    %v1141 = vadd.f32 %v1131, %v1140
    %v1142 = vadd.f32 %v1135, %v1140
    %vm1143 = vcmp.ge.f32.partialorder %v1141, 0.0
    %vm1144 = vcmp.ge.f32.partialorder %v1142, 0.0
    %v1145 = vmul.f32 %v1141, 0.2
    %v1146 = vmul.f32 %v1142, 0.2
    %v1147 = vsel %vm1143, %v1141, %v1145
    %v1148 = vsel %vm1144, %v1142, %v1146
    %v1149 = vsel %vm189, %v1147, -1e+30
    %v1150 = vsel %vm190, %v1148, -1e+30
    %v1151 = vsel %vm193, %v1149, -inf
    %1152 = vmax.xlane.f32.xlu0 %v1151
    %v1153 = vpop.xlane.xlu0 %1152
    %v1154 = vsel %vm193, %v1150, -inf
    %1155 = vmax.xlane.f32.xlu0 %v1154
    %v1156 = vpop.xlane.xlu0 %1155
    %v1157 = vsub.f32 %v1149, %v1153
    %v1158 = vsub.f32 %v1150, %v1156
    %v1159 = vmul.f32 %v1157, 1.442695
    %v1160 = vpow.pop %v1159
    %v1161 = vmul.f32 %v1158, 1.442695
    %v1162 = vpow.pop %v1161
    %v1163 = vsel %vm193, %v1160, 0.0
    %1164 = vadd.xlane.f32.xlu0 %v1163
    %v1165 = vpop.xlane.xlu0 %1164
    %v1166 = vsel %vm193, %v1162, 0.0
    %1167 = vadd.xlane.f32.xlu0 %v1166
    %v1168 = vpop.xlane.xlu0 %1167
    %v1169 = vpack.c.bf16 %v1162, %v1160
    %1171 = vrot.lane.b32.xlu0 %v940, 120
    %v1172 = vpop.permute.xlu0 %1171
    %v1175 = vsel %vm193, %v1169, 0
    %1177 = vmatprep.subr.bf16.mxu0 0
    %1178 = vmatpush1.bf16.msra.mxu0 0
    %1179 = vmatprep.subr.bf16.mxu0 0
    %1180 = vmatpush1.bf16.msra.mxu0 0
    %1181 = vmatprep.subr.bf16.mxu0 0
    %1182 = vmatpush1.bf16.msra.mxu0 0
    %1183 = vmatprep.subr.bf16.mxu0 0
    %1184 = vmatpush1.bf16.msra.mxu0 0
    %1185 = vmatprep.subr.bf16.mxu0 0
    %1186 = vmatpush1.bf16.msra.mxu0 0
    %1187 = vmatprep.subr.bf16.mxu0 0
    %1188 = vmatpush1.bf16.msra.mxu0 0
    %1189 = vmatprep.subr.bf16.mxu0 0
    %1190 = vmatpush1.bf16.msra.mxu0 0
    %1191 = vmatprep.subr.bf16.mxu0 0
    %1192 = vmatpush1.bf16.msra.mxu0 %v1172
    %1193 = vmatprep.subr.bf16.mxu0 0
    %1194 = vmatpush2.bf16.msra.mxu0 0
    %1195 = vmatprep.subr.bf16.mxu0 0
    %1196 = vmatpush2.bf16.msra.mxu0 0
    %1197 = vmatprep.subr.bf16.mxu0 0
    %1198 = vmatpush2.bf16.msra.mxu0 0
    %1199 = vmatprep.subr.bf16.mxu0 0
    %1200 = vmatpush2.bf16.msra.mxu0 0
    %1201 = vmatprep.subr.bf16.mxu0 0
    %1202 = vmatpush2.bf16.msra.mxu0 0
    %1203 = vmatprep.subr.bf16.mxu0 0
    %1204 = vmatpush2.bf16.msra.mxu0 0
    %1205 = vmatprep.subr.bf16.mxu0 0
    %1206 = vmatpush2.bf16.msra.mxu0 0
    %1207 = vmatprep.subr.bf16.mxu0 0
    %1208 = vmatpush2.bf16.msra.mxu0 0
    %1209 = vmatprep.mubr.bf16.mxu0 0
    %1210 = vmatmul.mubr.bf16.gmra.mxu0 %v1175
    %v1211 = vpop.f32.mrf.mxu0
    %v1212 = vadd.f32 0.0, %v1211
    %v1213 = vpop.f32.mrf.mxu0
    %v1214 = vpop.f32.mrf.mxu0
    %v1215 = vadd.f32 0.0, %v1214
    %v1216 = vpop.f32.mrf.mxu0
    %1217 = vdwg.mxu0
    %v1218 = vrcp.pop %v1165
    %v1219 = vrcp.pop %v1168
    %v1220 = vmul.f32 %v1212, %v1218
    %v1221 = vmul.f32 %v1215, %v1219
    %1222 = vrot.lane.b32.xlu0 %v853, 109
    %v1223 = vpop.permute.xlu0 %1222
    %1224 = vrot.lane.b32.xlu0 %v856, 109
    %v1225 = vpop.permute.xlu0 %1224
    %1228 = vxpose.xlu0.b32.start [1/16] %v1223, 128
    %1229 = vxpose.xlu0.b32.cont [2/16] %v1225, 128
    %1230 = vxpose.xlu0.b32.cont [3/16] 0.0, 128
    %1231 = vxpose.xlu0.b32.cont [4/16] 0.0, 128
    %1232 = vxpose.xlu0.b32.cont [5/16] 0.0, 128
    %1233 = vxpose.xlu0.b32.cont [6/16] 0.0, 128
    %1234 = vxpose.xlu0.b32.cont [7/16] 0.0, 128
    %1235 = vxpose.xlu0.b32.cont [8/16] 0.0, 128
    %1236 = vxpose.xlu0.b32.cont [9/16] 0.0, 128
    %1237 = vxpose.xlu0.b32.cont [10/16] 0.0, 128
    %1238 = vxpose.xlu0.b32.cont [11/16] 0.0, 128
    %1239 = vxpose.xlu0.b32.cont [12/16] 0.0, 128
    %1240 = vxpose.xlu0.b32.cont [13/16] 0.0, 128
    %1241 = vxpose.xlu0.b32.cont [14/16] 0.0, 128
    %1242 = vxpose.xlu0.b32.cont [15/16] 0.0, 128
    %1243 = vxpose.xlu0.b32.end [16/16] 0.0, 128
    %v1244 = vpop.trf.xlu0
    %v1245 = vpop.trf.xlu0
    %v1246 = vpop.trf.xlu0
    %v1247 = vpop.trf.xlu0
    %v1248 = vpop.trf.xlu0
    %v1249 = vpop.trf.xlu0
    %v1250 = vpop.trf.xlu0
    %v1251 = vpop.trf.xlu0
    %v1252 = vpop.trf.xlu0
    %v1253 = vpop.trf.xlu0
    %v1254 = vpop.trf.xlu0
    %v1255 = vpop.trf.xlu0
    %v1256 = vpop.trf.xlu0
    %v1257 = vpop.trf.xlu0
    %v1258 = vpop.trf.xlu0
    %v1259 = vpop.trf.xlu0
    %1260 = vxpose.xlu0.b32.start [1/16] %v1153, 128
    %1261 = vxpose.xlu0.b32.cont [2/16] %v1156, 128
    %1262 = vxpose.xlu0.b32.cont [3/16] 0.0, 128
    %1263 = vxpose.xlu0.b32.cont [4/16] 0.0, 128
    %1264 = vxpose.xlu0.b32.cont [5/16] 0.0, 128
    %1265 = vxpose.xlu0.b32.cont [6/16] 0.0, 128
    %1266 = vxpose.xlu0.b32.cont [7/16] 0.0, 128
    %1267 = vxpose.xlu0.b32.cont [8/16] 0.0, 128
    %1268 = vxpose.xlu0.b32.cont [9/16] 0.0, 128
    %1269 = vxpose.xlu0.b32.cont [10/16] 0.0, 128
    %1270 = vxpose.xlu0.b32.cont [11/16] 0.0, 128
    %1271 = vxpose.xlu0.b32.cont [12/16] 0.0, 128
    %1272 = vxpose.xlu0.b32.cont [13/16] 0.0, 128
    %1273 = vxpose.xlu0.b32.cont [14/16] 0.0, 128
    %1274 = vxpose.xlu0.b32.cont [15/16] 0.0, 128
    %1275 = vxpose.xlu0.b32.end [16/16] 0.0, 128
    %v1276 = vpop.trf.xlu0
    %v1277 = vpop.trf.xlu0
    %v1278 = vpop.trf.xlu0
    %v1279 = vpop.trf.xlu0
    %v1280 = vpop.trf.xlu0
    %v1281 = vpop.trf.xlu0
    %v1282 = vpop.trf.xlu0
    %v1283 = vpop.trf.xlu0
    %v1284 = vpop.trf.xlu0
    %v1285 = vpop.trf.xlu0
    %v1286 = vpop.trf.xlu0
    %v1287 = vpop.trf.xlu0
    %v1288 = vpop.trf.xlu0
    %v1289 = vpop.trf.xlu0
    %v1290 = vpop.trf.xlu0
    %v1291 = vpop.trf.xlu0
    %1292 = vxpose.xlu0.b32.start [1/16] %v1165, 128
    %1293 = vxpose.xlu0.b32.cont [2/16] %v1168, 128
    %1294 = vxpose.xlu0.b32.cont [3/16] 0.0, 128
    %1295 = vxpose.xlu0.b32.cont [4/16] 0.0, 128
    %1296 = vxpose.xlu0.b32.cont [5/16] 0.0, 128
    %1297 = vxpose.xlu0.b32.cont [6/16] 0.0, 128
    %1298 = vxpose.xlu0.b32.cont [7/16] 0.0, 128
    %1299 = vxpose.xlu0.b32.cont [8/16] 0.0, 128
    %1300 = vxpose.xlu0.b32.cont [9/16] 0.0, 128
    %1301 = vxpose.xlu0.b32.cont [10/16] 0.0, 128
    %1302 = vxpose.xlu0.b32.cont [11/16] 0.0, 128
    %1303 = vxpose.xlu0.b32.cont [12/16] 0.0, 128
    %1304 = vxpose.xlu0.b32.cont [13/16] 0.0, 128
    %1305 = vxpose.xlu0.b32.cont [14/16] 0.0, 128
    %1306 = vxpose.xlu0.b32.cont [15/16] 0.0, 128
    %1307 = vxpose.xlu0.b32.end [16/16] 0.0, 128
    %v1308 = vpop.trf.xlu0
    %v1309 = vpop.trf.xlu0
    %v1310 = vpop.trf.xlu0
    %v1311 = vpop.trf.xlu0
    %v1312 = vpop.trf.xlu0
    %v1313 = vpop.trf.xlu0
    %v1314 = vpop.trf.xlu0
    %v1315 = vpop.trf.xlu0
    %v1316 = vpop.trf.xlu0
    %v1317 = vpop.trf.xlu0
    %v1318 = vpop.trf.xlu0
    %v1319 = vpop.trf.xlu0
    %v1320 = vpop.trf.xlu0
    %v1321 = vpop.trf.xlu0
    %v1322 = vpop.trf.xlu0
    %v1323 = vpop.trf.xlu0
    %1326 = vrot.lane.b32.xlu0 %v1220, 8
    %v1327 = vpop.permute.xlu0 %1326
    %1328 = vrot.lane.b32.xlu0 %v1221, 8
    %v1329 = vpop.permute.xlu0 %1328
    %v1332 = vsel %vm76, %v987, %v1327
    %v1333 = vsel %vm76, %v988, %v1329
    %v1334 = vld [vmem:[%s7] sm:$0x1]
    %v1336 = vlaneseq
    %v1337 = vshrl.u32 %v1336, 7
    %v1338 = vsub.s32 0, %v1337
    %v1339 = vrot.slane %v1334, %v1338
    %v1341 = vadd.f32 %v1332, %v1339
    %v1342 = vadd.f32 %v1333, %v1339
    %v1344 = vrot.slane %v1244, 7
    %v1347 = vrot.slane %v1043, 6
    %v1350 = vrot.slane %v1276, 5
    %v1353 = vrot.slane %v1075, 4
    %v1356 = vrot.slane %v1308, 3
    %v1358 = vsel %vm631, %v1011, %v1344
    %v1359 = vsel %vm633, %v1358, %v1347
    %v1360 = vsel %vm635, %v1359, %v1350
    %v1361 = vsel %vm80, %v1360, %v1353
    %v1362 = vsel %vm638, %v1361, %v1356
    %v1364 = vrot.slane %v1113, 7
    %v1366 = vsel %vm631, %v883, %v1364
    %v1368 = vsel %vm193, %v1362, 0
    %1370 = vmatprep.subr.mxu0 0.0
    %1371 = vmatpush1.msra.mxu0 0.0
    %1372 = vmatprep.subr.mxu0 0.0
    %1373 = vmatpush1.msra.mxu0 0.0
    %1374 = vmatprep.subr.mxu0 0.0
    %1375 = vmatpush1.msra.mxu0 0.0
    %1376 = vmatprep.subr.mxu0 0.0
    %1377 = vmatpush1.msra.mxu0 0.0
    %1378 = vmatprep.subr.mxu0 0.0
    %1379 = vmatpush1.msra.mxu0 0.0
    %1380 = vmatprep.subr.mxu0 0.0
    %1381 = vmatpush1.msra.mxu0 0.0
    %1382 = vmatprep.subr.mxu0 0.0
    %1383 = vmatpush1.msra.mxu0 0.0
    %1384 = vmatprep.subr.mxu0 0.0
    %1385 = vmatpush1.msra.mxu0 0.0
    %1386 = vmatprep.subr.mxu0 0.0
    %1387 = vmatpush1.msra.mxu0 0.0
    %1388 = vmatprep.subr.mxu0 0.0
    %1389 = vmatpush1.msra.mxu0 0.0
    %1390 = vmatprep.subr.mxu0 0.0
    %1391 = vmatpush1.msra.mxu0 0.0
    %1392 = vmatprep.subr.mxu0 0.0
    %1393 = vmatpush1.msra.mxu0 0.0
    %1394 = vmatprep.subr.mxu0 0.0
    %1395 = vmatpush1.msra.mxu0 0.0
    %1396 = vmatprep.subr.mxu0 0.0
    %1397 = vmatpush1.msra.mxu0 0.0
    %1398 = vmatprep.subr.mxu0 0.0
    %1399 = vmatpush1.msra.mxu0 %v71
    %1400 = vmatprep.subr.mxu0 0.0
    %1401 = vmatpush1.msra.mxu0 %v70
    %1402 = vmatprep.subr.mxu0 0.0
    %1403 = vmatpush2.msra.mxu0 0.0
    %1404 = vmatprep.subr.mxu0 0.0
    %1405 = vmatpush2.msra.mxu0 0.0
    %1406 = vmatprep.subr.mxu0 0.0
    %1407 = vmatpush2.msra.mxu0 0.0
    %1408 = vmatprep.subr.mxu0 0.0
    %1409 = vmatpush2.msra.mxu0 0.0
    %1410 = vmatprep.subr.mxu0 0.0
    %1411 = vmatpush2.msra.mxu0 0.0
    %1412 = vmatprep.subr.mxu0 0.0
    %1413 = vmatpush2.msra.mxu0 0.0
    %1414 = vmatprep.subr.mxu0 0.0
    %1415 = vmatpush2.msra.mxu0 0.0
    %1416 = vmatprep.subr.mxu0 0.0
    %1417 = vmatpush2.msra.mxu0 0.0
    %1418 = vmatprep.subr.mxu0 0.0
    %1419 = vmatpush2.msra.mxu0 0.0
    %1420 = vmatprep.subr.mxu0 0.0
    %1421 = vmatpush2.msra.mxu0 0.0
    %1422 = vmatprep.subr.mxu0 0.0
    %1423 = vmatpush2.msra.mxu0 0.0
    %1424 = vmatprep.subr.mxu0 0.0
    %1425 = vmatpush2.msra.mxu0 0.0
    %1426 = vmatprep.subr.mxu0 0.0
    %1427 = vmatpush2.msra.mxu0 0.0
    %1428 = vmatprep.subr.mxu0 0.0
    %1429 = vmatpush2.msra.mxu0 0.0
    %1430 = vmatprep.subr.mxu0 0.0
    %1431 = vmatpush2.msra.mxu0 0.0
    %1432 = vmatprep.subr.mxu0 0.0
    %1433 = vmatpush2.msra.mxu0 0.0
    %1434 = vmatprep.mubr.f32.mxu0 0.0
    %1435 = vmatmul.mubr.f32.gmra.mxu0 %v1368
    %v1436 = vpop.f32.mrf.mxu0
    %v1437 = vadd.f32 0.0, %v1436
    %v1438 = vpop.f32.mrf.mxu0
    %1439 = vdwg.mxu0
    %v1441 = vsel %vm193, %v1366, 0
    %1443 = vmatprep.subr.mxu0 0.0
    %1444 = vmatpush1.msra.mxu0 0.0
    %1445 = vmatprep.subr.mxu0 0.0
    %1446 = vmatpush1.msra.mxu0 0.0
    %1447 = vmatprep.subr.mxu0 0.0
    %1448 = vmatpush1.msra.mxu0 0.0
    %1449 = vmatprep.subr.mxu0 0.0
    %1450 = vmatpush1.msra.mxu0 0.0
    %1451 = vmatprep.subr.mxu0 0.0
    %1452 = vmatpush1.msra.mxu0 0.0
    %1453 = vmatprep.subr.mxu0 0.0
    %1454 = vmatpush1.msra.mxu0 0.0
    %1455 = vmatprep.subr.mxu0 0.0
    %1456 = vmatpush1.msra.mxu0 0.0
    %1457 = vmatprep.subr.mxu0 0.0
    %1458 = vmatpush1.msra.mxu0 0.0
    %1459 = vmatprep.subr.mxu0 0.0
    %1460 = vmatpush1.msra.mxu0 0.0
    %1461 = vmatprep.subr.mxu0 0.0
    %1462 = vmatpush1.msra.mxu0 0.0
    %1463 = vmatprep.subr.mxu0 0.0
    %1464 = vmatpush1.msra.mxu0 0.0
    %1465 = vmatprep.subr.mxu0 0.0
    %1466 = vmatpush1.msra.mxu0 0.0
    %1467 = vmatprep.subr.mxu0 0.0
    %1468 = vmatpush1.msra.mxu0 0.0
    %1469 = vmatprep.subr.mxu0 0.0
    %1470 = vmatpush1.msra.mxu0 0.0
    %1471 = vmatprep.subr.mxu0 0.0
    %1472 = vmatpush1.msra.mxu0 %v69
    %1473 = vmatprep.subr.mxu0 0.0
    %1474 = vmatpush1.msra.mxu0 %v68
    %1475 = vmatprep.subr.mxu0 0.0
    %1476 = vmatpush2.msra.mxu0 0.0
    %1477 = vmatprep.subr.mxu0 0.0
    %1478 = vmatpush2.msra.mxu0 0.0
    %1479 = vmatprep.subr.mxu0 0.0
    %1480 = vmatpush2.msra.mxu0 0.0
    %1481 = vmatprep.subr.mxu0 0.0
    %1482 = vmatpush2.msra.mxu0 0.0
    %1483 = vmatprep.subr.mxu0 0.0
    %1484 = vmatpush2.msra.mxu0 0.0
    %1485 = vmatprep.subr.mxu0 0.0
    %1486 = vmatpush2.msra.mxu0 0.0
    %1487 = vmatprep.subr.mxu0 0.0
    %1488 = vmatpush2.msra.mxu0 0.0
    %1489 = vmatprep.subr.mxu0 0.0
    %1490 = vmatpush2.msra.mxu0 0.0
    %1491 = vmatprep.subr.mxu0 0.0
    %1492 = vmatpush2.msra.mxu0 0.0
    %1493 = vmatprep.subr.mxu0 0.0
    %1494 = vmatpush2.msra.mxu0 0.0
    %1495 = vmatprep.subr.mxu0 0.0
    %1496 = vmatpush2.msra.mxu0 0.0
    %1497 = vmatprep.subr.mxu0 0.0
    %1498 = vmatpush2.msra.mxu0 0.0
    %1499 = vmatprep.subr.mxu0 0.0
    %1500 = vmatpush2.msra.mxu0 0.0
    %1501 = vmatprep.subr.mxu0 0.0
    %1502 = vmatpush2.msra.mxu0 0.0
    %1503 = vmatprep.subr.mxu0 0.0
    %1504 = vmatpush2.msra.mxu0 0.0
    %1505 = vmatprep.subr.mxu0 0.0
    %1506 = vmatpush2.msra.mxu0 0.0
    %1507 = vmatprep.mubr.f32.mxu0 0.0
    %1508 = vmatmul.mubr.f32.gmra.mxu0 %v1441
    %v1509 = vpop.f32.mrf.mxu0
    %v1510 = vadd.f32 0.0, %v1509
    %v1511 = vpop.f32.mrf.mxu0
    %1512 = vdwg.mxu0
    %v1513 = vadd.f32 %v1437, %v1510
    %vm1514 = vcmp.ge.f32.partialorder %v1513, 0.0
    %v1515 = vmul.f32 %v1513, 0.2
    %v1516 = vsel %vm1514, %v1513, %v1515
    %v1518 = vrot.slane %v1437, 2
    %v1520 = vsub.f32 %v1516, %v1518
    %v1521 = vmul.f32 %v1520, 1.442695
    %v1522 = vpow.pop %v1521
    %v1523 = vrot.slane %v1437, 4
    %v1525 = vrcp.pop %v1523
    %v1526 = vmul.f32 %v1522, %v1525
    %1527 = vst.msk [vmem:[#allocation7] sm:$0xff] %vm193, %v1341
    %1528 = vst.msk [vmem:[#allocation7 + $0x8] sm:$0xff] %vm193, %v1342
    %v1530 = vrot.slane %v1526, 6
    %v1532 = vsel %vm633, %v803, %v1530
    %1533 = vst [vmem:[#allocation8] sm:$0xf] %v1532
    // Predicated region
    $region42: #{tpu_custom_call.1} parent=1 // pred_check
      _
    $region43: #{tpu_custom_call.1} parent=1 // pred_check_branch
      %1535 = sbr.rel (0) target = $region45
    $region44: #{tpu_custom_call.1} parent=1 // pred_region
      %s1537 = ssub.s32 256, 256
      %1538 = vsyncadd [#allocation4], %s1537
      %s1539 = sshll.u32 [#allocation7], 4
      %s1540 = int_to_ptr.vmem [resolvable:$true] %s1539
      %1545 = dma.vmem_to_hbm [thread:$0]  %s1540, 256, %s8, [#allocation4], 128, 128, 8
    $region45: #{tpu_custom_call.1} parent=1 // pred_fallthru
      _
    // Predicated region
    $region46: #{tpu_custom_call.1} parent=1 // pred_check
      _
    $region47: #{tpu_custom_call.1} parent=1 // pred_check_branch
      %1547 = sbr.rel (0) target = $region49
    $region48: #{tpu_custom_call.1} parent=1 // pred_region
      %s1549 = ssub.s32 64, 64
      %1550 = vsyncadd [#allocation9], %s1549
      %s1552 = sshll.u32 [#allocation8], 4
      %s1553 = int_to_ptr.vmem [resolvable:$true] %s1552
      %1555 = dma.vmem_to_hbm [thread:$0]  %s1553, 64, %s9, [#allocation9]
    $region49: #{tpu_custom_call.1} parent=1 // pred_fallthru
      _
    // Predicated region
    $region50: #{tpu_custom_call.1} parent=1 // pred_check
      _
    $region51: #{tpu_custom_call.1} parent=1 // pred_check_branch
      %1557 = sbr.rel (0) target = $region53
    $region52: #{tpu_custom_call.1} parent=1 // pred_region
      %1558 = dma.done [#allocation4], 256
    $region53: #{tpu_custom_call.1} parent=1 // pred_fallthru
      _
    // Predicated region
    $region54: #{tpu_custom_call.1} parent=1 // pred_check
      _
    $region55: #{tpu_custom_call.1} parent=1 // pred_check_branch
      %1560 = sbr.rel (0) target = $region57
    $region56: #{tpu_custom_call.1} parent=1 // pred_region
      %1561 = dma.done [#allocation9], 64
    $region57: #{tpu_custom_call.1} parent=1 // pred_fallthru
      _
    %1562 = vsyncpa [#allocation3], 1
    %1563 = vsyncpa [#allocation6], 1
    %1564 = vsyncpa [#allocation4], 1
    %1565 = vsyncpa [#allocation9], 1

</llo_original>
